<compile_context>
chip_gen: v7x
topology: tpu7x:2x2x1
jax: 0.10.0
libtpu: 0.0.40
codegen_flags: <defaults>
</compile_context>

<pallas_src>
import functools
import math

import numpy as np
import jax
import jax.numpy as jnp
from jax.experimental import pallas as pl
from jax.experimental.pallas import tpu as pltpu


_TARGET_ROWS = 512           # target tile_h * Wo output positions per grid step
_IM2COL_SLAB_CAP = 8 << 20   # cap on the in-kernel bf16 im2col slab, bytes


def _pair(v):
    if isinstance(v, (tuple, list)):
        return (int(v[0]), int(v[1]))
    return (int(v), int(v))


def _vmem_limit_bytes():
    # Generation-aware scoped-VMEM limit.
    try:
        cap = int(pltpu.get_tpu_info().vmem_capacity_bytes)
    except Exception:
        cap = 64 * 1024 * 1024
    if cap >= 128 * 1024 * 1024:
        return 100 * 1024 * 1024          # v5e / v6e: leave ~28 MiB headroom
    return (3 * cap) // 4                 # v7x (64 MiB physical): 48 MiB


def _mxu_width():
    try:
        kind = jax.devices()[0].device_kind.lower()
    except Exception:
        return 128
    if ("v6" in kind) or ("v7" in kind) or ("tpu7" in kind) or ("7x" in kind):
        return 256                        # 256-wide MXU generations
    return 128                            # v2 - v5


def _pick_tile_co(cout_g, kh, kw, cin_g):
    if cout_g < 128:
        return cout_g                     # natural width: no pad-to-128 + crop pass
    tco = 256 if (_mxu_width() == 256 and cout_g >= 256) else 128
    # keep the double-buffered bf16 weight block comfortably inside VMEM
    if tco > 128 and 2 * 2 * kh * kw * cin_g * tco > (16 << 20):
        tco = 128
    return tco


def _pick_tile_h(ho, wo, kh, kw, cin_g):
    # Target ~_TARGET_ROWS flattened output positions per grid step, bounded so
    # the (tile_h*Wo, KH*KW*Cin) bf16 im2col slab stays under _IM2COL_SLAB_CAP,
    # and aligned so tile_h*Wo is a multiple of 8 (sublane-friendly blocks).
    row_bytes = 2 * kh * kw * cin_g
    target = min(_TARGET_ROWS, max(64, _IM2COL_SLAB_CAP // max(row_bytes, 1)))
    base = max(1, target // max(wo, 1))
    if base >= ho:
        return ho
    align = 8 // math.gcd(wo, 8)
    tile_h = max(align, (base // align) * align)
    return ho if tile_h >= ho else tile_h


def _conv_tile_kernel(x_ref, w_ref, b_ref, o_ref, *, KH, KW, tile_h, Wo,
                      stride, dilation):
    """One (batch n, Cout tile, output-row tile) grid step.

    x_ref : (win_rows, Wp, Cin)    bf16  input row window for this tile
    w_ref : (KH*KW*Cin, tile_co)   bf16  dequantized weight slab for this Cout tile
    b_ref : (1, tile_co)           f32   bias for this Cout tile
    o_ref : (tile_h*Wo, tile_co)         flattened output tile
    """
    sh, sw = stride
    dh, dw = dilation
    _, _, Cin = x_ref.shape

    # im2col: read every (kh, kw) tap window straight from the VMEM ref and
    # concatenate along the channel axis -> one fused matmul with
    # K = KH*KW*Cin instead of KH*KW matmuls with K = Cin.
    taps = []
    for kh in range(KH):
        if sh == 1:
            rsl = pl.ds(kh * dh, tile_h)
        else:
            # TODO(synk): stride>1 path implemented but not exercised by the
            # self-test below.
            rsl = pl.ds(kh * dh, tile_h, stride=sh)
        for kw in range(KW):
            if sw == 1:
                csl = pl.ds(kw * dw, Wo)
            else:
                csl = pl.ds(kw * dw, Wo, stride=sw)
            taps.append(x_ref[rsl, csl, :])            # (tile_h, Wo, Cin)

    lhs = taps[0] if len(taps) == 1 else jnp.concatenate(taps, axis=-1)
    lhs = lhs.reshape(tile_h * Wo, KH * KW * Cin)       # (rows, K_fused)

    acc = jnp.dot(lhs, w_ref[...], preferred_element_type=jnp.float32)
    acc = acc + b_ref[...]                              # (1, tile_co) broadcast
    o_ref[...] = acc.astype(o_ref.dtype)


def _conv2d_one_group(x_pad, w2d, bias_vec, *, Ho, Wo, KH, KW, stride,
                      dilation, tile_h, out_dtype):
    """Standard (groups == 1) conv over one channel group via pallas_call."""
    N, Hp, Wp, Cin = x_pad.shape
    M, Cout = w2d.shape
    sh, sw = stride
    dh, dw = dilation

    tile_co = _pick_tile_co(Cout, KH, KW, Cin)
    cout_pad = pl.cdiv(Cout, tile_co) * tile_co
    n_co = cout_pad // tile_co

    n_h = pl.cdiv(Ho, tile_h)
    ho_pad = n_h * tile_h
    rows_per_tile = tile_h * Wo
    win_rows = (tile_h - 1) * sh + (KH - 1) * dh + 1

    w_p = w2d if cout_pad == Cout else jnp.pad(w2d, ((0, 0), (0, cout_pad - Cout)))
    b_p = jnp.pad(bias_vec.astype(jnp.float32),
                  (0, cout_pad - Cout)).reshape(1, cout_pad)

    # Overlapping input row windows, one per output-row tile, so the kernel
    # only ever holds a bounded (win_rows, Wp, Cin) slab in VMEM (fits v7x's
    # 64 MiB) instead of the whole padded image.
    starts = [h * tile_h * sh for h in range(n_h)]
    x_win = jnp.stack(
        [jax.lax.slice_in_dim(x_pad, s, s + win_rows, axis=1) for s in starts],
        axis=1)                                         # (N, n_h, win_rows, Wp, Cin)

    kernel = functools.partial(_conv_tile_kernel, KH=KH, KW=KW, tile_h=tile_h,
                               Wo=Wo, stride=stride, dilation=dilation)

    flops = 2 * N * Ho * Wo * KH * KW * Cin * Cout
    bytes_accessed = (x_win.size * x_win.dtype.itemsize * n_co
                      + N * w_p.size * w_p.dtype.itemsize
                      + N * ho_pad * Wo * cout_pad * jnp.dtype(out_dtype).itemsize)

    out = pl.pallas_call(
        kernel,
        out_shape=jax.ShapeDtypeStruct((N, ho_pad * Wo, cout_pad), out_dtype),
        grid=(N, n_co, n_h),
        in_specs=[
            # one row window per (n, h); constant over co so it is revisited
            # across the Cout tiles of the same row tile.
            pl.BlockSpec((None, None, win_rows, Wp, Cin),
                         lambda n, co, h: (n, h, 0, 0, 0)),
            # weight slab constant over h (innermost) -> fetched once per (n, co).
            pl.BlockSpec((M, tile_co), lambda n, co, h: (0, co)),
            pl.BlockSpec((1, tile_co), lambda n, co, h: (0, co)),
        ],
        out_specs=pl.BlockSpec((None, rows_per_tile, tile_co),
                               lambda n, co, h: (n, h, co)),
        compiler_params=pltpu.CompilerParams(
            dimension_semantics=("parallel", "parallel", "parallel"),
            vmem_limit_bytes=_vmem_limit_bytes()),
        cost_estimate=pl.CostEstimate(flops=flops, transcendentals=0,
                                      bytes_accessed=bytes_accessed),
    )(x_win, w_p, b_p)

    out = out.reshape(N, ho_pad, Wo, cout_pad)
    if ho_pad != Ho or cout_pad != Cout:
        out = out[:, :Ho, :, :Cout]
    return out


def fp8_palettized_conv2d(x_nchw, weight_idx_u8, lookup_table, bias,
                          stride=(1, 1), dilation=(1, 1), groups=1,
                          padding=(0, 0), compute_dtype=jnp.bfloat16,
                          out_dtype=jnp.float32):
    """Forward pass of FP8PalettizedConv2d. x is NCHW, weight indices OIHW uint8."""
    stride = _pair(stride)
    dilation = _pair(dilation)
    padding = _pair(padding)
    sh, sw = stride
    dh, dw = dilation
    ph, pw = padding

    N, Cin, H, W = x_nchw.shape
    Cout, Cin_g, KH, KW = weight_idx_u8.shape
    assert Cin_g * groups == Cin and Cout % groups == 0
    Cout_g = Cout // groups

    Ho = (H + 2 * ph - dh * (KH - 1) - 1) // sh + 1
    Wo = (W + 2 * pw - dw * (KW - 1) - 1) // sw + 1

    # --- palette dequantization: weight-static, done once at trace time.  The
    # LUT holds fp8_e4m3-representable values, so the bf16 cast is exact. ---
    lut = jnp.asarray(lookup_table, jnp.float32)
    full_w = lut[weight_idx_u8.astype(jnp.int32)]              # (Cout, Cin_g, KH, KW)
    w2d = jnp.transpose(full_w, (2, 3, 1, 0)).reshape(KH * KW * Cin_g, Cout)
    w2d = w2d.astype(compute_dtype)
    # TODO(synk): on v7x the fp8 MXU could take the weights in 1-byte form; kept
    # in bf16 here for cross-generation portability.

    if bias is None:
        bias_vec = jnp.zeros((Cout,), jnp.float32)
    else:
        bias_vec = jnp.asarray(bias, jnp.float32).reshape(Cout)

    # Activations: NCHW -> NHWC (channels on lanes), compute_dtype MXU operands.
    # TODO(synk): compute_dtype=jnp.float32 matches PyTorch fp32 conv numerics
    # exactly at ~1/3 MXU throughput; bf16 is the TPU-native default here.
    x_nhwc = jnp.transpose(x_nchw, (0, 2, 3, 1)).astype(compute_dtype)

    tile_h = _pick_tile_h(Ho, Wo, KH, KW, Cin_g)
    n_h = pl.cdiv(Ho, tile_h)
    ho_pad = n_h * tile_h

    # Spatial zero-padding; pad a little further so every row tile's input
    # window stays in bounds.
    hp_needed = (ho_pad - 1) * sh + dh * (KH - 1) + 1
    wp_needed = (Wo - 1) * sw + dw * (KW - 1) + 1
    pad_b = ph + max(0, hp_needed - (H + 2 * ph))
    pad_r = pw + max(0, wp_needed - (W + 2 * pw))
    x_pad = jnp.pad(x_nhwc, ((0, 0), (ph, pad_b), (pw, pad_r), (0, 0)))

    outs = []
    for g in range(groups):
        xg = x_pad if groups == 1 else x_pad[..., g * Cin_g:(g + 1) * Cin_g]
        wg = w2d if groups == 1 else w2d[:, g * Cout_g:(g + 1) * Cout_g]
        bg = bias_vec if groups == 1 else bias_vec[g * Cout_g:(g + 1) * Cout_g]
        outs.append(_conv2d_one_group(xg, wg, bg, Ho=Ho, Wo=Wo, KH=KH, KW=KW,
                                      stride=stride, dilation=dilation,
                                      tile_h=tile_h, out_dtype=out_dtype))
    # TODO(synk): groups run as independent pallas_calls; folding the groups
    # into a 4th grid axis (block-diagonal weights) would remove this concat.
    out_nhwc = outs[0] if groups == 1 else jnp.concatenate(outs, axis=-1)

    return jnp.transpose(out_nhwc, (0, 3, 1, 2))               # back to NCHW


def _palettize(w_f32):
    # Deterministic palettization mirroring the module's __init__ (fp8_e4m3
    # unique values -> lookup table, exact match -> uint8 indices).
    # TODO(synk): the sklearn-KMeans construction is init-time only; replaced
    # by the equivalent exact np.unique/searchsorted assignment here.
    w_fp8 = np.asarray(w_f32.astype(jnp.float8_e4m3fn)).astype(np.float64)
    lut = np.unique(w_fp8.reshape(-1))
    idx = np.searchsorted(lut, w_fp8.reshape(-1)).astype(np.uint8).reshape(w_fp8.shape)
    assert idx.max() < 256
    return idx, lut.astype(np.float32)


def _reference(x, idx, lut, bias, stride, dilation, groups, padding):
    # Pure-JAX reference with identically-prepared operands (bf16-rounded
    # activations, exact fp8-valued weights, f32 accumulation).
    full_w = jnp.asarray(lut[idx.astype(np.int32)])
    x_in = x.astype(jnp.bfloat16).astype(jnp.float32)
    ref = jax.lax.conv_general_dilated(
        x_in, full_w, window_strides=stride,
        padding=[(padding[0], padding[0]), (padding[1], padding[1])],
        rhs_dilation=dilation,
        dimension_numbers=("NCHW", "OIHW", "NCHW"),
        feature_group_count=groups,
        precision=jax.lax.Precision.HIGHEST)
    return ref + bias.reshape(1, -1, 1, 1)


if __name__ == "__main__":
    key = jax.random.PRNGKey(0)

    def run_case(case_key, N, Cin, H, W, Cout, KH, KW, stride, dilation,
                 groups, padding):
        kx, kw_, kb = jax.random.split(case_key, 3)
        x = jax.random.normal(kx, (N, Cin, H, W), jnp.float32)
        w_f32 = jax.random.normal(kw_, (Cout, Cin // groups, KH, KW),
                                  jnp.float32) * 0.1
        bias = jax.random.normal(kb, (Cout,), jnp.float32) * 0.05
        idx, lut = _palettize(w_f32)

        out = fp8_palettized_conv2d(x, jnp.asarray(idx), jnp.asarray(lut), bias,
                                    stride, dilation, groups, padding)
        out = jax.block_until_ready(out)

        ref = _reference(x, idx, lut, bias, stride, dilation, groups, padding)
        np.testing.assert_allclose(np.asarray(out), np.asarray(ref),
                                   rtol=5e-4, atol=5e-4)

    k1, k2 = jax.random.split(key)
    # Primary case: groups=1, stride=1, dilation=1, padding=1.
    run_case(k1, N=2, Cin=4, H=16, W=16, Cout=8, KH=3, KW=3,
             stride=(1, 1), dilation=(1, 1), groups=1, padding=(1, 1))
    # Grouped + dilated case: exercises per-group channel slicing and the
    # dilation offsets in the tap windows.
    run_case(k2, N=2, Cin=8, H=16, W=16, Cout=8, KH=3, KW=3,
             stride=(1, 1), dilation=(2, 2), groups=2, padding=(2, 2))

    print("KERNEL_OK")
</pallas_src>

<mosaic_0001>
module attributes {stable_mosaic.version = 11 : i64} {
  func.func @_conv_tile_kernel(%arg0: i32, %arg1: i32, %arg2: i32, %arg3: memref<1x1x18x18x4xbf16, #tpu.memory_space<vmem>>, %arg4: memref<36x8xbf16, #tpu.memory_space<vmem>>, %arg5: memref<1x8xf32, #tpu.memory_space<vmem>>, %arg6: memref<1x256x8xf32, #tpu.memory_space<vmem>>) attributes {dimension_semantics = [#tpu.dimension_semantics<parallel>, #tpu.dimension_semantics<parallel>, #tpu.dimension_semantics<parallel>], iteration_bounds = array<i64: 2, 1, 1>, scalar_prefetch = 0 : i64, scratch_operands = 0 : i64, tpu.core_type = #tpu.core_type<tc>, window_params = [{transform_indices = @transform_0, window_bounds = array<i64: 1, 1, 18, 18, 4>}, {transform_indices = @transform_1, window_bounds = array<i64: 36, 8>}, {transform_indices = @transform_2, window_bounds = array<i64: 1, 8>}, {transform_indices = @transform_3, window_bounds = array<i64: 1, 256, 8>}]} {
    %c0 = arith.constant 0 : index
    %c0_0 = arith.constant 0 : index
    %c0_1 = arith.constant 0 : index
    %c0_2 = arith.constant 0 : index
    %c0_3 = arith.constant 0 : index
    %0 = vector.load %arg3[%c0, %c0_0, %c0_1, %c0_2, %c0_3] : memref<1x1x18x18x4xbf16, #tpu.memory_space<vmem>>, vector<1x1x16x16x4xbf16>
    %1 = vector.shape_cast %0 : vector<1x1x16x16x4xbf16> to vector<16x16x4xbf16>
    %c0_4 = arith.constant 0 : index
    %c0_5 = arith.constant 0 : index
    %c0_6 = arith.constant 0 : index
    %c1 = arith.constant 1 : index
    %c0_7 = arith.constant 0 : index
    %2 = vector.load %arg3[%c0_4, %c0_5, %c0_6, %c1, %c0_7] : memref<1x1x18x18x4xbf16, #tpu.memory_space<vmem>>, vector<1x1x16x16x4xbf16>
    %3 = vector.shape_cast %2 : vector<1x1x16x16x4xbf16> to vector<16x16x4xbf16>
    %c0_8 = arith.constant 0 : index
    %c0_9 = arith.constant 0 : index
    %c0_10 = arith.constant 0 : index
    %c2 = arith.constant 2 : index
    %c0_11 = arith.constant 0 : index
    %4 = vector.load %arg3[%c0_8, %c0_9, %c0_10, %c2, %c0_11] : memref<1x1x18x18x4xbf16, #tpu.memory_space<vmem>>, vector<1x1x16x16x4xbf16>
    %5 = vector.shape_cast %4 : vector<1x1x16x16x4xbf16> to vector<16x16x4xbf16>
    %c0_12 = arith.constant 0 : index
    %c0_13 = arith.constant 0 : index
    %c1_14 = arith.constant 1 : index
    %c0_15 = arith.constant 0 : index
    %c0_16 = arith.constant 0 : index
    %6 = vector.load %arg3[%c0_12, %c0_13, %c1_14, %c0_15, %c0_16] : memref<1x1x18x18x4xbf16, #tpu.memory_space<vmem>>, vector<1x1x16x16x4xbf16>
    %7 = vector.shape_cast %6 : vector<1x1x16x16x4xbf16> to vector<16x16x4xbf16>
    %c0_17 = arith.constant 0 : index
    %c0_18 = arith.constant 0 : index
    %c1_19 = arith.constant 1 : index
    %c1_20 = arith.constant 1 : index
    %c0_21 = arith.constant 0 : index
    %8 = vector.load %arg3[%c0_17, %c0_18, %c1_19, %c1_20, %c0_21] : memref<1x1x18x18x4xbf16, #tpu.memory_space<vmem>>, vector<1x1x16x16x4xbf16>
    %9 = vector.shape_cast %8 : vector<1x1x16x16x4xbf16> to vector<16x16x4xbf16>
    %c0_22 = arith.constant 0 : index
    %c0_23 = arith.constant 0 : index
    %c1_24 = arith.constant 1 : index
    %c2_25 = arith.constant 2 : index
    %c0_26 = arith.constant 0 : index
    %10 = vector.load %arg3[%c0_22, %c0_23, %c1_24, %c2_25, %c0_26] : memref<1x1x18x18x4xbf16, #tpu.memory_space<vmem>>, vector<1x1x16x16x4xbf16>
    %11 = vector.shape_cast %10 : vector<1x1x16x16x4xbf16> to vector<16x16x4xbf16>
    %c0_27 = arith.constant 0 : index
    %c0_28 = arith.constant 0 : index
    %c2_29 = arith.constant 2 : index
    %c0_30 = arith.constant 0 : index
    %c0_31 = arith.constant 0 : index
    %12 = vector.load %arg3[%c0_27, %c0_28, %c2_29, %c0_30, %c0_31] : memref<1x1x18x18x4xbf16, #tpu.memory_space<vmem>>, vector<1x1x16x16x4xbf16>
    %13 = vector.shape_cast %12 : vector<1x1x16x16x4xbf16> to vector<16x16x4xbf16>
    %c0_32 = arith.constant 0 : index
    %c0_33 = arith.constant 0 : index
    %c2_34 = arith.constant 2 : index
    %c1_35 = arith.constant 1 : index
    %c0_36 = arith.constant 0 : index
    %14 = vector.load %arg3[%c0_32, %c0_33, %c2_34, %c1_35, %c0_36] : memref<1x1x18x18x4xbf16, #tpu.memory_space<vmem>>, vector<1x1x16x16x4xbf16>
    %15 = vector.shape_cast %14 : vector<1x1x16x16x4xbf16> to vector<16x16x4xbf16>
    %c0_37 = arith.constant 0 : index
    %c0_38 = arith.constant 0 : index
    %c2_39 = arith.constant 2 : index
    %c2_40 = arith.constant 2 : index
    %c0_41 = arith.constant 0 : index
    %16 = vector.load %arg3[%c0_37, %c0_38, %c2_39, %c2_40, %c0_41] : memref<1x1x18x18x4xbf16, #tpu.memory_space<vmem>>, vector<1x1x16x16x4xbf16>
    %17 = vector.shape_cast %16 : vector<1x1x16x16x4xbf16> to vector<16x16x4xbf16>
    %18 = tpu.concatenate %1, %3, %5, %7, %9, %11, %13, %15, %17 in 2 : vector<16x16x4xbf16>, vector<16x16x4xbf16>, vector<16x16x4xbf16>, vector<16x16x4xbf16>, vector<16x16x4xbf16>, vector<16x16x4xbf16>, vector<16x16x4xbf16>, vector<16x16x4xbf16>, vector<16x16x4xbf16> -> vector<16x16x36xbf16>
    %19 = vector.shape_cast %18 : vector<16x16x36xbf16> to vector<256x36xbf16>
    %c0_42 = arith.constant 0 : index
    %c0_43 = arith.constant 0 : index
    %20 = vector.load %arg4[%c0_42, %c0_43] : memref<36x8xbf16, #tpu.memory_space<vmem>>, vector<36x8xbf16>
    %cst = arith.constant dense<0.000000e+00> : vector<256x8xf32>
    %21 = tpu.matmul %19, %20, %cst {dimension_numbers = #tpu.dot_dimension_numbers<[1], [0], [0], [1], [0, 0, 1, 1], [], []>} : vector<256x36xbf16>, vector<36x8xbf16>, vector<256x8xf32> -> vector<256x8xf32>
    %c0_44 = arith.constant 0 : index
    %c0_45 = arith.constant 0 : index
    %22 = vector.load %arg5[%c0_44, %c0_45] : memref<1x8xf32, #tpu.memory_space<vmem>>, vector<1x8xf32>
    %23 = vector.broadcast %22 : vector<1x8xf32> to vector<256x8xf32>
    %24 = arith.addf %21, %23 : vector<256x8xf32>
    %c0_46 = arith.constant 0 : index
    %c0_47 = arith.constant 0 : index
    %c0_48 = arith.constant 0 : index
    %25 = vector.load %arg6[%c0_46, %c0_47, %c0_48] : memref<1x256x8xf32, #tpu.memory_space<vmem>>, vector<1x256x8xf32>
    %26 = vector.shape_cast %25 : vector<1x256x8xf32> to vector<256x8xf32>
    %27 = vector.shape_cast %24 : vector<256x8xf32> to vector<1x256x8xf32>
    tpu.vector_store %arg6[%c0_46, %c0_47, %c0_48], %27 {strides = array<i32>} : memref<1x256x8xf32, #tpu.memory_space<vmem>>, vector<1x256x8xf32>,
    return
  }
  func.func @transform_0(%arg0: i32, %arg1: i32, %arg2: i32) -> (i32, i32, i32, i32, i32) {
    %c0_i32 = arith.constant 0 : i32
    %c0_i32_0 = arith.constant 0 : i32
    %c0_i32_1 = arith.constant 0 : i32
    %c0_i32_2 = arith.constant 0 : i32
    return %arg0, %arg2, %c0_i32, %c0_i32_0, %c0_i32_1 : i32, i32, i32, i32, i32
  }
  func.func @transform_1(%arg0: i32, %arg1: i32, %arg2: i32) -> (i32, i32) {
    %c0_i32 = arith.constant 0 : i32
    %c0_i32_0 = arith.constant 0 : i32
    return %c0_i32, %arg1 : i32, i32
  }
  func.func @transform_2(%arg0: i32, %arg1: i32, %arg2: i32) -> (i32, i32) {
    %c0_i32 = arith.constant 0 : i32
    %c0_i32_0 = arith.constant 0 : i32
    return %c0_i32, %arg1 : i32, i32
  }
  func.func @transform_3(%arg0: i32, %arg1: i32, %arg2: i32) -> (i32, i32, i32) {
    %c0_i32 = arith.constant 0 : i32
    return %arg0, %arg2, %arg1 : i32, i32, i32
  }
}

</mosaic_0001>

<llo_original>
// kernel: tpu_custom_call.1
$region0: #{tpu_custom_call.1}
  #allocation0 [shape = 'u32[]', space=smem, size = 0x4, offset = 0x4, fixed_abs, tag = 'smem constant byte address 0x4 - core index']
  #allocation1 [shape = 'u32[144,128]{1,0:T(1,128)}', space=vmem, size = 0x12000, scoped, tag = 'internal scratch']
  %s0 = inlined_call_operand.vmem [shape: bf16[2,1,18,18,4], index: 0, kind: input, shape index: {}]
  %s1 = inlined_call_operand.vmem [shape: bf16[36,8], index: 1, kind: input, shape index: {}]
  %s2 = inlined_call_operand.vmem [shape: f32[1,8], index: 2, kind: input, shape index: {}]
  %s3 = inlined_call_operand.vmem [shape: f32[2,256,8], index: 3, kind: output, shape index: {}]
  %s4 = sld [smem:[#allocation0]]
  $region45: #{tpu_custom_call.1} parent=0
    _
  %s6 = ssub.s32 1, %s4
  %s7 = scalar_select 0, %s6, %s4
  loop: start=0, step=1, limit=4
  $region2: #{tpu_custom_call.1} parent=0 // loop_pre_header
    _
  $region3: #{tpu_custom_call.1} parent=0 // loop_header
    %s9 = sphi 0, %s13
    %p10 = scmp.ge.s32.totalorder %s9, 4
    %s16 = sphi 0, %s35
    %s17 = sphi 0, %s31
    %s18 = sphi 0, %s27
    %s19 = sphi 0, %s16
    %s20 = sphi 0, %s17
    %s21 = sphi 0, %s18
    %s22 = sphi 0, %s19
    %s23 = sphi 0, %s20
    %s24 = sphi 0, %s21
    %s40 = sphi 0, %s42
    %s43 = sphi 0, %s40
    %s44 = sphi 0, %s43
    %s60 = sphi 0, %s44
    %s66 = sphi 0, %s68
    %s69 = sphi 0, %s66
    %s70 = sphi 0, %s69
    %s86 = sphi 0, %s70
    %s92 = sphi 0, %s94
    %s95 = sphi 0, %s92
    %s96 = sphi 0, %s95
    %s112 = sphi 0, %s96
    %s122 = sphi 0, %s124
    %s125 = sphi 0, %s122
    %s126 = sphi 0, %s125
    %s142 = sphi 0, %s126
  $region4: #{tpu_custom_call.1} parent=0 // loop_header_branch
    %12 = sbr.rel (%p10) target = $region8
  $region5: #{tpu_custom_call.1} parent=0 // loop_body
    %s14 = ssub.s32 %s9, 1
    %s15 = ssub.s32 %s9, 2
    %s25 = sadd.s32 1, %s18
    %p26 = scmp.ge.s32.totalorder %s25, 1
    %s27 = scalar_select %p26, 0, %s25
    %s28 = sadd.s32 1, %s17
    %s29 = scalar_select %p26, %s28, %s17
    %p30 = scmp.ge.s32.totalorder %s29, 1
    %s31 = scalar_select %p30, 0, %s29
    %s32 = sadd.s32 1, %s16
    %s33 = scalar_select %p30, %s32, %s16
    %p34 = scmp.ge.s32.totalorder %s33, 2
    %s35 = scalar_select %p34, 0, %s33
    %s36 = ssub.s32 %s16, %s35
    %s37 = ssub.s32 %s18, %s27
    %s38 = sor.u32 %s36, %s37
    %p39 = scmp.eq.s32.totalorder %s38, 0
    %s41 = sadd.s32 %s40, 1
    %s42 = scalar_select %p39, %s40, %s41
    %p45 = pneg %p39
    %p46 = scmp.eq.s32.totalorder %s9, 1
    %p47 = por %p45, %p46
    %p48 = scmp.ne.s32.totalorder %s40, %s43
    %p49 = scmp.eq.s32.totalorder %s9, 0
    %p50 = por %p48, %p49
    %p51 = scmp.ne.s32.totalorder %s40, %s43
    %p52 = scmp.eq.s32.totalorder %s14, 1
    %p53 = por %p51, %p52
    %p54 = scmp.ne.s32.totalorder %s43, %s44
    %p55 = scmp.eq.s32.totalorder %s14, 0
    %p56 = por %p54, %p55
    %p57 = scmp.ne.s32.totalorder %s43, %s44
    %p58 = scmp.eq.s32.totalorder %s15, 1
    %p59 = por %p57, %p58
    %p61 = scmp.ne.s32.totalorder %s44, %s60
    %p62 = scmp.eq.s32.totalorder %s15, 0
    %p63 = por %p61, %p62
    %s64 = ssub.s32 %s17, %s31
    %p65 = scmp.eq.s32.totalorder %s64, 0
    %s67 = sadd.s32 %s66, 1
    %s68 = scalar_select %p65, %s66, %s67
    %p71 = pneg %p65
    %p72 = scmp.eq.s32.totalorder %s9, 1
    %p73 = por %p71, %p72
    %p74 = scmp.ne.s32.totalorder %s66, %s69
    %p75 = scmp.eq.s32.totalorder %s9, 0
    %p76 = por %p74, %p75
    %p77 = scmp.ne.s32.totalorder %s66, %s69
    %p78 = scmp.eq.s32.totalorder %s14, 1
    %p79 = por %p77, %p78
    %p80 = scmp.ne.s32.totalorder %s69, %s70
    %p81 = scmp.eq.s32.totalorder %s14, 0
    %p82 = por %p80, %p81
    %p83 = scmp.ne.s32.totalorder %s69, %s70
    %p84 = scmp.eq.s32.totalorder %s15, 1
    %p85 = por %p83, %p84
    %p87 = scmp.ne.s32.totalorder %s70, %s86
    %p88 = scmp.eq.s32.totalorder %s15, 0
    %p89 = por %p87, %p88
    %s90 = ssub.s32 %s17, %s31
    %p91 = scmp.eq.s32.totalorder %s90, 0
    %s93 = sadd.s32 %s92, 1
    %s94 = scalar_select %p91, %s92, %s93
    %p97 = pneg %p91
    %p98 = scmp.eq.s32.totalorder %s9, 1
    %p99 = por %p97, %p98
    %p100 = scmp.ne.s32.totalorder %s92, %s95
    %p101 = scmp.eq.s32.totalorder %s9, 0
    %p102 = por %p100, %p101
    %p103 = scmp.ne.s32.totalorder %s92, %s95
    %p104 = scmp.eq.s32.totalorder %s14, 1
    %p105 = por %p103, %p104
    %p106 = scmp.ne.s32.totalorder %s95, %s96
    %p107 = scmp.eq.s32.totalorder %s14, 0
    %p108 = por %p106, %p107
    %p109 = scmp.ne.s32.totalorder %s95, %s96
    %p110 = scmp.eq.s32.totalorder %s15, 1
    %p111 = por %p109, %p110
    %p113 = scmp.ne.s32.totalorder %s96, %s112
    %p114 = scmp.eq.s32.totalorder %s15, 0
    %p115 = por %p113, %p114
    %s116 = ssub.s32 %s16, %s35
    %s117 = ssub.s32 %s18, %s27
    %s118 = sor.u32 %s116, %s117
    %s119 = ssub.s32 %s17, %s31
    %s120 = sor.u32 %s118, %s119
    %p121 = scmp.eq.s32.totalorder %s120, 0
    %s123 = sadd.s32 %s122, 1
    %s124 = scalar_select %p121, %s122, %s123
    %p127 = pneg %p121
    %p128 = scmp.eq.s32.totalorder %s9, 1
    %p129 = por %p127, %p128
    %p130 = scmp.ne.s32.totalorder %s122, %s125
    %p131 = scmp.eq.s32.totalorder %s9, 0
    %p132 = por %p130, %p131
    %p133 = scmp.ne.s32.totalorder %s122, %s125
    %p134 = scmp.eq.s32.totalorder %s14, 1
    %p135 = por %p133, %p134
    %p136 = scmp.ne.s32.totalorder %s125, %s126
    %p137 = scmp.eq.s32.totalorder %s14, 0
    %p138 = por %p136, %p137
    %p139 = scmp.ne.s32.totalorder %s125, %s126
    %p140 = scmp.eq.s32.totalorder %s15, 1
    %p141 = por %p139, %p140
    %p143 = scmp.ne.s32.totalorder %s126, %s142
    %p144 = scmp.eq.s32.totalorder %s15, 0
    %p145 = por %p143, %p144
    %p146 = scmp.le.s32.totalorder 1, %s9
    %p147 = scmp.lt.s32.totalorder %s9, 3
    %p148 = pnand %p146, %p147
    %p149 = pneg %p148
    // Predicated region
    $region9: #{tpu_custom_call.1} parent=5 // pred_check
      _
    $region10: #{tpu_custom_call.1} parent=5 // pred_check_branch
      %151 = sbr.rel (%p148) target = $region12
    $region11: #{tpu_custom_call.1} parent=5 // pred_region
      %s152 = ssub.s32 %s9, 1
      // Predicated region
      $region13: #{tpu_custom_call.1} parent=11 // pred_check
        %p153 = pneg %p82
      $region14: #{tpu_custom_call.1} parent=11 // pred_check_branch
        %155 = sbr.rel (%p153) target = $region16
      $region15: #{tpu_custom_call.1} parent=11 // pred_region
        %p156 = scmp.lt.s32.totalorder %s20, 0
        %s157 = scalar_select %p156, %s20, 0
        %s158 = smul.addr %s157, 4
        %s159 = scalar_lea.vmem %s1, %s158
      $region16: #{tpu_custom_call.1} parent=11 // pred_fallthru
        _
      // Predicated region
      $region17: #{tpu_custom_call.1} parent=11 // pred_check
        %p160 = pneg %p108
      $region18: #{tpu_custom_call.1} parent=11 // pred_check_branch
        %162 = sbr.rel (%p160) target = $region20
      $region19: #{tpu_custom_call.1} parent=11 // pred_region
        %p163 = scmp.lt.s32.totalorder %s20, 0
        %s164 = scalar_select %p163, %s20, 0
        %s165 = scalar_lea.vmem %s2, %s164
      $region20: #{tpu_custom_call.1} parent=11 // pred_fallthru
        _
    $region12: #{tpu_custom_call.1} parent=5 // pred_fallthru
      _
    %p166 = scmp.lt.s32.totalorder %s9, 2
    // Predicated region
    $region21: #{tpu_custom_call.1} parent=5 // pred_check
      %p167 = pneg %p166
    $region22: #{tpu_custom_call.1} parent=5 // pred_check_branch
      %169 = sbr.rel (%p167) target = $region24
    $region23: #{tpu_custom_call.1} parent=5 // pred_region
      // Predicated region
      $region25: #{tpu_custom_call.1} parent=23 // pred_check
        %p170 = pneg %p50
      $region26: #{tpu_custom_call.1} parent=23 // pred_check_branch
        %172 = sbr.rel (%p170) target = $region28
      $region27: #{tpu_custom_call.1} parent=23 // pred_region
        %p173 = scmp.lt.s32.totalorder %s16, 1
        %s174 = scalar_select %p173, %s16, 1
        %p175 = scmp.lt.s32.totalorder %s18, 0
        %s176 = scalar_select %p175, %s18, 0
        %s177 = smul.addr %s176, 54
        %s178 = smul.addr %s174, 54
        %s179 = sadd.s32 %s177, %s178
        %s180 = smul.addr %s179, 4
        %s181 = scalar_lea.vmem %s0, %s180
      $region28: #{tpu_custom_call.1} parent=23 // pred_fallthru
        _
    $region24: #{tpu_custom_call.1} parent=5 // pred_fallthru
      _
    %p182 = scmp.le.s32.totalorder 1, %s9
    %p183 = scmp.lt.s32.totalorder %s9, 3
    %p184 = pnand %p182, %p183
    %p185 = pneg %p184
    // Predicated region
    $region29: #{tpu_custom_call.1} parent=5 // pred_check
      _
    $region30: #{tpu_custom_call.1} parent=5 // pred_check_branch
      %187 = sbr.rel (%p184) target = $region32
    $region31: #{tpu_custom_call.1} parent=5 // pred_region
      %s188 = ssub.s32 %s9, 1
      %p189 = scmp.lt.s32.totalorder %s19, 1
      %s190 = scalar_select %p189, %s19, 1
      %p191 = scmp.lt.s32.totalorder %s21, 0
      %s192 = scalar_select %p191, %s21, 0
      %s193 = smul.addr %s192, 54
      %s194 = smul.addr %s190, 54
      %s195 = sadd.s32 %s193, %s194
      %s196 = smul.addr %s195, 4
      %s197 = scalar_lea.vmem %s0, %s196
      %p198 = pneg %p56
      %p199 = pneg %p53
      %p200 = scmp.lt.s32.totalorder %s20, 0
      %s201 = scalar_select %p200, %s20, 0
      %s202 = smul.addr %s201, 4
      %s203 = scalar_lea.vmem %s1, %s202
      %p204 = pneg %p82
      %p205 = pneg %p79
      %p206 = scmp.lt.s32.totalorder %s20, 0
      %s207 = scalar_select %p206, %s20, 0
      %s208 = scalar_lea.vmem %s2, %s207
      %p209 = pneg %p108
      %p210 = pneg %p105
      %p211 = pneg %p138
      %p212 = pneg %p135
      %s213 = smul.u32 32, %s21
      %p214 = scmp.lt.s32.totalorder %s19, 1
      %s215 = scalar_select %p214, %s19, 1
      %p216 = scmp.lt.s32.totalorder %s213, 31
      %s217 = scalar_select %p216, %s213, 31
      %p218 = scmp.lt.s32.totalorder %s20, 0
      %s219 = scalar_select %p218, %s20, 0
      %s220 = sadd.s32 %s219, %s217
      %s221 = smul.addr %s215, 32
      %s222 = sadd.s32 %s220, %s221
      %s223 = smul.addr %s222, 8
      %s224 = scalar_lea.vmem %s3, %s223
      %p225 = scmp.lt.s32.totalorder %s19, 1
      %s226 = scalar_select %p225, %s19, 1
      %p227 = scmp.lt.s32.totalorder %s21, 0
      %s228 = scalar_select %p227, %s21, 0
      %s229 = smul.addr %s228, 54
      %s230 = smul.addr %s226, 54
      %s231 = sadd.s32 %s229, %s230
      %s232 = smul.addr %s231, 4
      %s233 = scalar_lea.vmem %s0, %s232
      %p234 = scmp.lt.s32.totalorder %s20, 0
      %s235 = scalar_select %p234, %s20, 0
      %s236 = smul.addr %s235, 4
      %s237 = scalar_lea.vmem %s1, %s236
      %p238 = scmp.lt.s32.totalorder %s20, 0
      %s239 = scalar_select %p238, %s20, 0
      %s240 = scalar_lea.vmem %s2, %s239
      %s241 = smul.u32 32, %s21
      %p242 = scmp.lt.s32.totalorder %s19, 1
      %s243 = scalar_select %p242, %s19, 1
      %p244 = scmp.lt.s32.totalorder %s241, 31
      %s245 = scalar_select %p244, %s241, 31
      %p246 = scmp.lt.s32.totalorder %s20, 0
      %s247 = scalar_select %p246, %s20, 0
      %s248 = sadd.s32 %s247, %s245
      %s249 = smul.addr %s243, 32
      %s250 = sadd.s32 %s248, %s249
      %s251 = smul.addr %s250, 8
      %s252 = scalar_lea.vmem %s3, %s251
      %s253 = smul.u32 32, %s21
      %v255 = vld [vmem:[%s233] sm:$0xf]
      %v256 = vld [vmem:[%s233 + $0x4] sm:$0xf]
      %v257 = vld [vmem:[%s233 + $0xc] sm:$0xf]
      %v258 = vld [vmem:[%s233 + $0x10] sm:$0xf]
      %v259 = vld [vmem:[%s233 + $0x18] sm:$0xf]
      %v260 = vld [vmem:[%s233 + $0x1c] sm:$0xf]
      %v261 = vld [vmem:[%s233 + $0x24] sm:$0xf]
      %v262 = vld [vmem:[%s233 + $0x28] sm:$0xf]
      %v263 = vld [vmem:[%s233 + $0x30] sm:$0xf]
      %v264 = vld [vmem:[%s233 + $0x34] sm:$0xf]
      %v265 = vld [vmem:[%s233 + $0x3c] sm:$0xf]
      %v266 = vld [vmem:[%s233 + $0x40] sm:$0xf]
      %v267 = vld [vmem:[%s233 + $0x48] sm:$0xf]
      %v268 = vld [vmem:[%s233 + $0x4c] sm:$0xf]
      %v269 = vld [vmem:[%s233 + $0x54] sm:$0xf]
      %v270 = vld [vmem:[%s233 + $0x58] sm:$0xf]
      %v271 = vld [vmem:[%s233 + $0x60] sm:$0xf]
      %v272 = vld [vmem:[%s233 + $0x64] sm:$0xf]
      %v273 = vld [vmem:[%s233 + $0x6c] sm:$0xf]
      %v274 = vld [vmem:[%s233 + $0x70] sm:$0xf]
      %v275 = vld [vmem:[%s233 + $0x78] sm:$0xf]
      %v276 = vld [vmem:[%s233 + $0x7c] sm:$0xf]
      %v277 = vld [vmem:[%s233 + $0x84] sm:$0xf]
      %v278 = vld [vmem:[%s233 + $0x88] sm:$0xf]
      %v279 = vld [vmem:[%s233 + $0x90] sm:$0xf]
      %v280 = vld [vmem:[%s233 + $0x94] sm:$0xf]
      %v281 = vld [vmem:[%s233 + $0x9c] sm:$0xf]
      %v282 = vld [vmem:[%s233 + $0xa0] sm:$0xf]
      %v283 = vld [vmem:[%s233 + $0xa8] sm:$0xf]
      %v284 = vld [vmem:[%s233 + $0xac] sm:$0xf]
      %v285 = vld [vmem:[%s233 + $0xb4] sm:$0xf]
      %v286 = vld [vmem:[%s233 + $0xb8] sm:$0xf]
      %v287 = vld [vmem:[%s233 + $0x8] sm:$0x1]
      %v288 = vld [vmem:[%s233 + $0x14] sm:$0x1]
      %v289 = vld [vmem:[%s233 + $0x20] sm:$0x1]
      %v290 = vld [vmem:[%s233 + $0x2c] sm:$0x1]
      %v291 = vld [vmem:[%s233 + $0x38] sm:$0x1]
      %v292 = vld [vmem:[%s233 + $0x44] sm:$0x1]
      %v293 = vld [vmem:[%s233 + $0x50] sm:$0x1]
      %v294 = vld [vmem:[%s233 + $0x5c] sm:$0x1]
      %v295 = vld [vmem:[%s233 + $0x68] sm:$0x1]
      %v296 = vld [vmem:[%s233 + $0x74] sm:$0x1]
      %v297 = vld [vmem:[%s233 + $0x80] sm:$0x1]
      %v298 = vld [vmem:[%s233 + $0x8c] sm:$0x1]
      %v299 = vld [vmem:[%s233 + $0x98] sm:$0x1]
      %v300 = vld [vmem:[%s233 + $0xa4] sm:$0x1]
      %v301 = vld [vmem:[%s233 + $0xb0] sm:$0x1]
      %v302 = vld [vmem:[%s233 + $0xbc] sm:$0x1]
      %v303 = vld [vmem:[%s233] sm:$0xe]
      %v304 = vld [vmem:[%s233 + $0xc] sm:$0xe]
      %v305 = vld [vmem:[%s233 + $0x18] sm:$0xe]
      %v306 = vld [vmem:[%s233 + $0x24] sm:$0xe]
      %v307 = vld [vmem:[%s233 + $0x30] sm:$0xe]
      %v308 = vld [vmem:[%s233 + $0x3c] sm:$0xe]
      %v309 = vld [vmem:[%s233 + $0x48] sm:$0xe]
      %v310 = vld [vmem:[%s233 + $0x54] sm:$0xe]
      %v311 = vld [vmem:[%s233 + $0x60] sm:$0xe]
      %v312 = vld [vmem:[%s233 + $0x6c] sm:$0xe]
      %v313 = vld [vmem:[%s233 + $0x78] sm:$0xe]
      %v314 = vld [vmem:[%s233 + $0x84] sm:$0xe]
      %v315 = vld [vmem:[%s233 + $0x90] sm:$0xe]
      %v316 = vld [vmem:[%s233 + $0x9c] sm:$0xe]
      %v317 = vld [vmem:[%s233 + $0xa8] sm:$0xe]
      %v318 = vld [vmem:[%s233 + $0xb4] sm:$0xe]
      %s319 = scalar_lea.vmem %s233, 12
      %v320 = vld [vmem:[%s319] sm:$0xf]
      %v321 = vld [vmem:[%s319 + $0x4] sm:$0xf]
      %v322 = vld [vmem:[%s319 + $0xc] sm:$0xf]
      %v323 = vld [vmem:[%s319 + $0x10] sm:$0xf]
      %v324 = vld [vmem:[%s319 + $0x18] sm:$0xf]
      %v325 = vld [vmem:[%s319 + $0x1c] sm:$0xf]
      %v326 = vld [vmem:[%s319 + $0x24] sm:$0xf]
      %v327 = vld [vmem:[%s319 + $0x28] sm:$0xf]
      %v328 = vld [vmem:[%s319 + $0x30] sm:$0xf]
      %v329 = vld [vmem:[%s319 + $0x34] sm:$0xf]
      %v330 = vld [vmem:[%s319 + $0x3c] sm:$0xf]
      %v331 = vld [vmem:[%s319 + $0x40] sm:$0xf]
      %v332 = vld [vmem:[%s319 + $0x48] sm:$0xf]
      %v333 = vld [vmem:[%s319 + $0x4c] sm:$0xf]
      %v334 = vld [vmem:[%s319 + $0x54] sm:$0xf]
      %v335 = vld [vmem:[%s319 + $0x58] sm:$0xf]
      %v336 = vld [vmem:[%s319 + $0x60] sm:$0xf]
      %v337 = vld [vmem:[%s319 + $0x64] sm:$0xf]
      %v338 = vld [vmem:[%s319 + $0x6c] sm:$0xf]
      %v339 = vld [vmem:[%s319 + $0x70] sm:$0xf]
      %v340 = vld [vmem:[%s319 + $0x78] sm:$0xf]
      %v341 = vld [vmem:[%s319 + $0x7c] sm:$0xf]
      %v342 = vld [vmem:[%s319 + $0x84] sm:$0xf]
      %v343 = vld [vmem:[%s319 + $0x88] sm:$0xf]
      %v344 = vld [vmem:[%s319 + $0x90] sm:$0xf]
      %v345 = vld [vmem:[%s319 + $0x94] sm:$0xf]
      %v346 = vld [vmem:[%s319 + $0x9c] sm:$0xf]
      %v347 = vld [vmem:[%s319 + $0xa0] sm:$0xf]
      %v348 = vld [vmem:[%s319 + $0xa8] sm:$0xf]
      %v349 = vld [vmem:[%s319 + $0xac] sm:$0xf]
      %v350 = vld [vmem:[%s319 + $0xb4] sm:$0xf]
      %v351 = vld [vmem:[%s319 + $0xb8] sm:$0xf]
      %v352 = vld [vmem:[%s319 + $0x8] sm:$0x1]
      %v353 = vld [vmem:[%s319 + $0x14] sm:$0x1]
      %v354 = vld [vmem:[%s319 + $0x20] sm:$0x1]
      %v355 = vld [vmem:[%s319 + $0x2c] sm:$0x1]
      %v356 = vld [vmem:[%s319 + $0x38] sm:$0x1]
      %v357 = vld [vmem:[%s319 + $0x44] sm:$0x1]
      %v358 = vld [vmem:[%s319 + $0x50] sm:$0x1]
      %v359 = vld [vmem:[%s319 + $0x5c] sm:$0x1]
      %v360 = vld [vmem:[%s319 + $0x68] sm:$0x1]
      %v361 = vld [vmem:[%s319 + $0x74] sm:$0x1]
      %v362 = vld [vmem:[%s319 + $0x80] sm:$0x1]
      %v363 = vld [vmem:[%s319 + $0x8c] sm:$0x1]
      %v364 = vld [vmem:[%s319 + $0x98] sm:$0x1]
      %v365 = vld [vmem:[%s319 + $0xa4] sm:$0x1]
      %v366 = vld [vmem:[%s319 + $0xb0] sm:$0x1]
      %v367 = vld [vmem:[%s319 + $0xbc] sm:$0x1]
      %v368 = vld [vmem:[%s319] sm:$0xe]
      %v369 = vld [vmem:[%s319 + $0xc] sm:$0xe]
      %v370 = vld [vmem:[%s319 + $0x18] sm:$0xe]
      %v371 = vld [vmem:[%s319 + $0x24] sm:$0xe]
      %v372 = vld [vmem:[%s319 + $0x30] sm:$0xe]
      %v373 = vld [vmem:[%s319 + $0x3c] sm:$0xe]
      %v374 = vld [vmem:[%s319 + $0x48] sm:$0xe]
      %v375 = vld [vmem:[%s319 + $0x54] sm:$0xe]
      %v376 = vld [vmem:[%s319 + $0x60] sm:$0xe]
      %v377 = vld [vmem:[%s319 + $0x6c] sm:$0xe]
      %v378 = vld [vmem:[%s319 + $0x78] sm:$0xe]
      %v379 = vld [vmem:[%s319 + $0x84] sm:$0xe]
      %v380 = vld [vmem:[%s319 + $0x90] sm:$0xe]
      %v381 = vld [vmem:[%s319 + $0x9c] sm:$0xe]
      %v382 = vld [vmem:[%s319 + $0xa8] sm:$0xe]
      %v383 = vld [vmem:[%s319 + $0xb4] sm:$0xe]
      %s384 = scalar_lea.vmem %s233, 24
      %v385 = vld [vmem:[%s384] sm:$0xf]
      %v386 = vld [vmem:[%s384 + $0x4] sm:$0xf]
      %v387 = vld [vmem:[%s384 + $0xc] sm:$0xf]
      %v388 = vld [vmem:[%s384 + $0x10] sm:$0xf]
      %v389 = vld [vmem:[%s384 + $0x18] sm:$0xf]
      %v390 = vld [vmem:[%s384 + $0x1c] sm:$0xf]
      %v391 = vld [vmem:[%s384 + $0x24] sm:$0xf]
      %v392 = vld [vmem:[%s384 + $0x28] sm:$0xf]
      %v393 = vld [vmem:[%s384 + $0x30] sm:$0xf]
      %v394 = vld [vmem:[%s384 + $0x34] sm:$0xf]
      %v395 = vld [vmem:[%s384 + $0x3c] sm:$0xf]
      %v396 = vld [vmem:[%s384 + $0x40] sm:$0xf]
      %v397 = vld [vmem:[%s384 + $0x48] sm:$0xf]
      %v398 = vld [vmem:[%s384 + $0x4c] sm:$0xf]
      %v399 = vld [vmem:[%s384 + $0x54] sm:$0xf]
      %v400 = vld [vmem:[%s384 + $0x58] sm:$0xf]
      %v401 = vld [vmem:[%s384 + $0x60] sm:$0xf]
      %v402 = vld [vmem:[%s384 + $0x64] sm:$0xf]
      %v403 = vld [vmem:[%s384 + $0x6c] sm:$0xf]
      %v404 = vld [vmem:[%s384 + $0x70] sm:$0xf]
      %v405 = vld [vmem:[%s384 + $0x78] sm:$0xf]
      %v406 = vld [vmem:[%s384 + $0x7c] sm:$0xf]
      %v407 = vld [vmem:[%s384 + $0x84] sm:$0xf]
      %v408 = vld [vmem:[%s384 + $0x88] sm:$0xf]
      %v409 = vld [vmem:[%s384 + $0x90] sm:$0xf]
      %v410 = vld [vmem:[%s384 + $0x94] sm:$0xf]
      %v411 = vld [vmem:[%s384 + $0x9c] sm:$0xf]
      %v412 = vld [vmem:[%s384 + $0xa0] sm:$0xf]
      %v413 = vld [vmem:[%s384 + $0xa8] sm:$0xf]
      %v414 = vld [vmem:[%s384 + $0xac] sm:$0xf]
      %v415 = vld [vmem:[%s384 + $0xb4] sm:$0xf]
      %v416 = vld [vmem:[%s384 + $0xb8] sm:$0xf]
      %v417 = vld [vmem:[%s384 + $0x8] sm:$0x1]
      %v418 = vld [vmem:[%s384 + $0x14] sm:$0x1]
      %v419 = vld [vmem:[%s384 + $0x20] sm:$0x1]
      %v420 = vld [vmem:[%s384 + $0x2c] sm:$0x1]
      %v421 = vld [vmem:[%s384 + $0x38] sm:$0x1]
      %v422 = vld [vmem:[%s384 + $0x44] sm:$0x1]
      %v423 = vld [vmem:[%s384 + $0x50] sm:$0x1]
      %v424 = vld [vmem:[%s384 + $0x5c] sm:$0x1]
      %v425 = vld [vmem:[%s384 + $0x68] sm:$0x1]
      %v426 = vld [vmem:[%s384 + $0x74] sm:$0x1]
      %v427 = vld [vmem:[%s384 + $0x80] sm:$0x1]
      %v428 = vld [vmem:[%s384 + $0x8c] sm:$0x1]
      %v429 = vld [vmem:[%s384 + $0x98] sm:$0x1]
      %v430 = vld [vmem:[%s384 + $0xa4] sm:$0x1]
      %v431 = vld [vmem:[%s384 + $0xb0] sm:$0x1]
      %v432 = vld [vmem:[%s384 + $0xbc] sm:$0x1]
      %v433 = vld [vmem:[%s384] sm:$0xe]
      %v434 = vld [vmem:[%s384 + $0xc] sm:$0xe]
      %v435 = vld [vmem:[%s384 + $0x18] sm:$0xe]
      %v436 = vld [vmem:[%s384 + $0x24] sm:$0xe]
      %v437 = vld [vmem:[%s384 + $0x30] sm:$0xe]
      %v438 = vld [vmem:[%s384 + $0x3c] sm:$0xe]
      %v439 = vld [vmem:[%s384 + $0x48] sm:$0xe]
      %v440 = vld [vmem:[%s384 + $0x54] sm:$0xe]
      %v441 = vld [vmem:[%s384 + $0x60] sm:$0xe]
      %v442 = vld [vmem:[%s384 + $0x6c] sm:$0xe]
      %v443 = vld [vmem:[%s384 + $0x78] sm:$0xe]
      %v444 = vld [vmem:[%s384 + $0x84] sm:$0xe]
      %v445 = vld [vmem:[%s384 + $0x90] sm:$0xe]
      %v446 = vld [vmem:[%s384 + $0x9c] sm:$0xe]
      %v447 = vld [vmem:[%s384 + $0xa8] sm:$0xe]
      %v448 = vld [vmem:[%s384 + $0xb4] sm:$0xe]
      %v481 = vunpack.c.l.b16 %v255
      %v482 = vunpack.c.l.b16 %v256
      %v483 = vunpack.c.l.b16 %v257
      %v484 = vunpack.c.l.b16 %v258
      %v485 = vunpack.c.l.b16 %v259
      %v486 = vunpack.c.l.b16 %v260
      %v487 = vunpack.c.l.b16 %v261
      %v488 = vunpack.c.l.b16 %v262
      %v489 = vunpack.c.l.b16 %v263
      %v490 = vunpack.c.l.b16 %v264
      %v491 = vunpack.c.l.b16 %v265
      %v492 = vunpack.c.l.b16 %v266
      %v493 = vunpack.c.l.b16 %v267
      %v494 = vunpack.c.l.b16 %v268
      %v495 = vunpack.c.l.b16 %v269
      %v496 = vunpack.c.l.b16 %v270
      %v497 = vunpack.c.l.b16 %v271
      %v498 = vunpack.c.l.b16 %v272
      %v499 = vunpack.c.l.b16 %v273
      %v500 = vunpack.c.l.b16 %v274
      %v501 = vunpack.c.l.b16 %v275
      %v502 = vunpack.c.l.b16 %v276
      %v503 = vunpack.c.l.b16 %v277
      %v504 = vunpack.c.l.b16 %v278
      %v505 = vunpack.c.l.b16 %v279
      %v506 = vunpack.c.l.b16 %v280
      %v507 = vunpack.c.l.b16 %v281
      %v508 = vunpack.c.l.b16 %v282
      %v509 = vunpack.c.l.b16 %v283
      %v510 = vunpack.c.l.b16 %v284
      %v511 = vunpack.c.l.b16 %v285
      %v512 = vunpack.c.l.b16 %v286
      %v513 = vpack.c.b16 %v482, %v481
      %v514 = vpack.c.b16 %v484, %v483
      %v515 = vpack.c.b16 %v486, %v485
      %v516 = vpack.c.b16 %v488, %v487
      %v517 = vpack.c.b16 %v490, %v489
      %v518 = vpack.c.b16 %v492, %v491
      %v519 = vpack.c.b16 %v494, %v493
      %v520 = vpack.c.b16 %v496, %v495
      %v521 = vpack.c.b16 %v498, %v497
      %v522 = vpack.c.b16 %v500, %v499
      %v523 = vpack.c.b16 %v502, %v501
      %v524 = vpack.c.b16 %v504, %v503
      %v525 = vpack.c.b16 %v506, %v505
      %v526 = vpack.c.b16 %v508, %v507
      %v527 = vpack.c.b16 %v510, %v509
      %v528 = vpack.c.b16 %v512, %v511
      %v545 = vunpack.c.l.b16 %v287
      %v546 = vunpack.c.l.b16 %v288
      %v547 = vunpack.c.l.b16 %v289
      %v548 = vunpack.c.l.b16 %v290
      %v549 = vunpack.c.l.b16 %v291
      %v550 = vunpack.c.l.b16 %v292
      %v551 = vunpack.c.l.b16 %v293
      %v552 = vunpack.c.l.b16 %v294
      %v553 = vunpack.c.l.b16 %v295
      %v554 = vunpack.c.l.b16 %v296
      %v555 = vunpack.c.l.b16 %v297
      %v556 = vunpack.c.l.b16 %v298
      %v557 = vunpack.c.l.b16 %v299
      %v558 = vunpack.c.l.b16 %v300
      %v559 = vunpack.c.l.b16 %v301
      %v560 = vunpack.c.l.b16 %v302
      %v561 = vpack.c.b16 %v545, %v545
      %v562 = vpack.c.b16 %v546, %v546
      %v563 = vpack.c.b16 %v547, %v547
      %v564 = vpack.c.b16 %v548, %v548
      %v565 = vpack.c.b16 %v549, %v549
      %v566 = vpack.c.b16 %v550, %v550
      %v567 = vpack.c.b16 %v551, %v551
      %v568 = vpack.c.b16 %v552, %v552
      %v569 = vpack.c.b16 %v553, %v553
      %v570 = vpack.c.b16 %v554, %v554
      %v571 = vpack.c.b16 %v555, %v555
      %v572 = vpack.c.b16 %v556, %v556
      %v573 = vpack.c.b16 %v557, %v557
      %v574 = vpack.c.b16 %v558, %v558
      %v575 = vpack.c.b16 %v559, %v559
      %v576 = vpack.c.b16 %v560, %v560
      %vm577 = vsmask.f32 7424
      %v579 = vshrl.u32 %v513, 16
      %v581 = vshll.u32 %v513, 16
      %v583 = vrot.slane %v581, 1
      %v584 = vor.u32 %v579, %v583
      %v586 = vshll.u32 %v561, 16
      %v588 = vrot.slane %v586, 1
      %v589 = vsel %vm577, %v584, %v588
      %v591 = vshrl.u32 %v514, 16
      %v593 = vshll.u32 %v514, 16
      %v595 = vrot.slane %v593, 1
      %v596 = vor.u32 %v591, %v595
      %v598 = vshll.u32 %v562, 16
      %v600 = vrot.slane %v598, 1
      %v601 = vsel %vm577, %v596, %v600
      %v603 = vshrl.u32 %v515, 16
      %v605 = vshll.u32 %v515, 16
      %v607 = vrot.slane %v605, 1
      %v608 = vor.u32 %v603, %v607
      %v610 = vshll.u32 %v563, 16
      %v612 = vrot.slane %v610, 1
      %v613 = vsel %vm577, %v608, %v612
      %v615 = vshrl.u32 %v516, 16
      %v617 = vshll.u32 %v516, 16
      %v619 = vrot.slane %v617, 1
      %v620 = vor.u32 %v615, %v619
      %v622 = vshll.u32 %v564, 16
      %v624 = vrot.slane %v622, 1
      %v625 = vsel %vm577, %v620, %v624
      %v627 = vshrl.u32 %v517, 16
      %v629 = vshll.u32 %v517, 16
      %v631 = vrot.slane %v629, 1
      %v632 = vor.u32 %v627, %v631
      %v634 = vshll.u32 %v565, 16
      %v636 = vrot.slane %v634, 1
      %v637 = vsel %vm577, %v632, %v636
      %v639 = vshrl.u32 %v518, 16
      %v641 = vshll.u32 %v518, 16
      %v643 = vrot.slane %v641, 1
      %v644 = vor.u32 %v639, %v643
      %v646 = vshll.u32 %v566, 16
      %v648 = vrot.slane %v646, 1
      %v649 = vsel %vm577, %v644, %v648
      %v651 = vshrl.u32 %v519, 16
      %v653 = vshll.u32 %v519, 16
      %v655 = vrot.slane %v653, 1
      %v656 = vor.u32 %v651, %v655
      %v658 = vshll.u32 %v567, 16
      %v660 = vrot.slane %v658, 1
      %v661 = vsel %vm577, %v656, %v660
      %v663 = vshrl.u32 %v520, 16
      %v665 = vshll.u32 %v520, 16
      %v667 = vrot.slane %v665, 1
      %v668 = vor.u32 %v663, %v667
      %v670 = vshll.u32 %v568, 16
      %v672 = vrot.slane %v670, 1
      %v673 = vsel %vm577, %v668, %v672
      %v675 = vshrl.u32 %v521, 16
      %v677 = vshll.u32 %v521, 16
      %v679 = vrot.slane %v677, 1
      %v680 = vor.u32 %v675, %v679
      %v682 = vshll.u32 %v569, 16
      %v684 = vrot.slane %v682, 1
      %v685 = vsel %vm577, %v680, %v684
      %v687 = vshrl.u32 %v522, 16
      %v689 = vshll.u32 %v522, 16
      %v691 = vrot.slane %v689, 1
      %v692 = vor.u32 %v687, %v691
      %v694 = vshll.u32 %v570, 16
      %v696 = vrot.slane %v694, 1
      %v697 = vsel %vm577, %v692, %v696
      %v699 = vshrl.u32 %v523, 16
      %v701 = vshll.u32 %v523, 16
      %v703 = vrot.slane %v701, 1
      %v704 = vor.u32 %v699, %v703
      %v706 = vshll.u32 %v571, 16
      %v708 = vrot.slane %v706, 1
      %v709 = vsel %vm577, %v704, %v708
      %v711 = vshrl.u32 %v524, 16
      %v713 = vshll.u32 %v524, 16
      %v715 = vrot.slane %v713, 1
      %v716 = vor.u32 %v711, %v715
      %v718 = vshll.u32 %v572, 16
      %v720 = vrot.slane %v718, 1
      %v721 = vsel %vm577, %v716, %v720
      %v723 = vshrl.u32 %v525, 16
      %v725 = vshll.u32 %v525, 16
      %v727 = vrot.slane %v725, 1
      %v728 = vor.u32 %v723, %v727
      %v730 = vshll.u32 %v573, 16
      %v732 = vrot.slane %v730, 1
      %v733 = vsel %vm577, %v728, %v732
      %v735 = vshrl.u32 %v526, 16
      %v737 = vshll.u32 %v526, 16
      %v739 = vrot.slane %v737, 1
      %v740 = vor.u32 %v735, %v739
      %v742 = vshll.u32 %v574, 16
      %v744 = vrot.slane %v742, 1
      %v745 = vsel %vm577, %v740, %v744
      %v747 = vshrl.u32 %v527, 16
      %v749 = vshll.u32 %v527, 16
      %v751 = vrot.slane %v749, 1
      %v752 = vor.u32 %v747, %v751
      %v754 = vshll.u32 %v575, 16
      %v756 = vrot.slane %v754, 1
      %v757 = vsel %vm577, %v752, %v756
      %v759 = vshrl.u32 %v528, 16
      %v761 = vshll.u32 %v528, 16
      %v763 = vrot.slane %v761, 1
      %v764 = vor.u32 %v759, %v763
      %v766 = vshll.u32 %v576, 16
      %v768 = vrot.slane %v766, 1
      %v769 = vsel %vm577, %v764, %v768
      %770 = vrot.lane.b32.xlu0 %v589, 4
      %v771 = vpop.permute.xlu0 %770
      %772 = vrot.lane.b32.xlu0 %v601, 4
      %v773 = vpop.permute.xlu0 %772
      %774 = vrot.lane.b32.xlu0 %v613, 4
      %v775 = vpop.permute.xlu0 %774
      %776 = vrot.lane.b32.xlu0 %v625, 4
      %v777 = vpop.permute.xlu0 %776
      %778 = vrot.lane.b32.xlu0 %v637, 4
      %v779 = vpop.permute.xlu0 %778
      %780 = vrot.lane.b32.xlu0 %v649, 4
      %v781 = vpop.permute.xlu0 %780
      %782 = vrot.lane.b32.xlu0 %v661, 4
      %v783 = vpop.permute.xlu0 %782
      %784 = vrot.lane.b32.xlu0 %v673, 4
      %v785 = vpop.permute.xlu0 %784
      %786 = vrot.lane.b32.xlu0 %v685, 4
      %v787 = vpop.permute.xlu0 %786
      %788 = vrot.lane.b32.xlu0 %v697, 4
      %v789 = vpop.permute.xlu0 %788
      %790 = vrot.lane.b32.xlu0 %v709, 4
      %v791 = vpop.permute.xlu0 %790
      %792 = vrot.lane.b32.xlu0 %v721, 4
      %v793 = vpop.permute.xlu0 %792
      %794 = vrot.lane.b32.xlu0 %v733, 4
      %v795 = vpop.permute.xlu0 %794
      %796 = vrot.lane.b32.xlu0 %v745, 4
      %v797 = vpop.permute.xlu0 %796
      %798 = vrot.lane.b32.xlu0 %v757, 4
      %v799 = vpop.permute.xlu0 %798
      %800 = vrot.lane.b32.xlu0 %v769, 4
      %v801 = vpop.permute.xlu0 %800
      %v818 = vunpack.c.l.b16 %v303
      %v819 = vunpack.c.l.b16 %v304
      %v820 = vunpack.c.l.b16 %v305
      %v821 = vunpack.c.l.b16 %v306
      %v822 = vunpack.c.l.b16 %v307
      %v823 = vunpack.c.l.b16 %v308
      %v824 = vunpack.c.l.b16 %v309
      %v825 = vunpack.c.l.b16 %v310
      %v826 = vunpack.c.l.b16 %v311
      %v827 = vunpack.c.l.b16 %v312
      %v828 = vunpack.c.l.b16 %v313
      %v829 = vunpack.c.l.b16 %v314
      %v830 = vunpack.c.l.b16 %v315
      %v831 = vunpack.c.l.b16 %v316
      %v832 = vunpack.c.l.b16 %v317
      %v833 = vunpack.c.l.b16 %v318
      %v834 = vpack.c.b16 %v482, %v818
      %v835 = vpack.c.b16 %v484, %v819
      %v836 = vpack.c.b16 %v486, %v820
      %v837 = vpack.c.b16 %v488, %v821
      %v838 = vpack.c.b16 %v490, %v822
      %v839 = vpack.c.b16 %v492, %v823
      %v840 = vpack.c.b16 %v494, %v824
      %v841 = vpack.c.b16 %v496, %v825
      %v842 = vpack.c.b16 %v498, %v826
      %v843 = vpack.c.b16 %v500, %v827
      %v844 = vpack.c.b16 %v502, %v828
      %v845 = vpack.c.b16 %v504, %v829
      %v846 = vpack.c.b16 %v506, %v830
      %v847 = vpack.c.b16 %v508, %v831
      %v848 = vpack.c.b16 %v510, %v832
      %v849 = vpack.c.b16 %v512, %v833
      %vm850 = vcmask 1046528
      %v851 = vrot.slane %v834, 1
      %v852 = vrot.slane %v561, 1
      %v853 = vsel %vm850, %v851, %v852
      %v854 = vrot.slane %v835, 1
      %v855 = vrot.slane %v562, 1
      %v856 = vsel %vm850, %v854, %v855
      %v857 = vrot.slane %v836, 1
      %v858 = vrot.slane %v563, 1
      %v859 = vsel %vm850, %v857, %v858
      %v860 = vrot.slane %v837, 1
      %v861 = vrot.slane %v564, 1
      %v862 = vsel %vm850, %v860, %v861
      %v863 = vrot.slane %v838, 1
      %v864 = vrot.slane %v565, 1
      %v865 = vsel %vm850, %v863, %v864
      %v866 = vrot.slane %v839, 1
      %v867 = vrot.slane %v566, 1
      %v868 = vsel %vm850, %v866, %v867
      %v869 = vrot.slane %v840, 1
      %v870 = vrot.slane %v567, 1
      %v871 = vsel %vm850, %v869, %v870
      %v872 = vrot.slane %v841, 1
      %v873 = vrot.slane %v568, 1
      %v874 = vsel %vm850, %v872, %v873
      %v875 = vrot.slane %v842, 1
      %v876 = vrot.slane %v569, 1
      %v877 = vsel %vm850, %v875, %v876
      %v878 = vrot.slane %v843, 1
      %v879 = vrot.slane %v570, 1
      %v880 = vsel %vm850, %v878, %v879
      %v881 = vrot.slane %v844, 1
      %v882 = vrot.slane %v571, 1
      %v883 = vsel %vm850, %v881, %v882
      %v884 = vrot.slane %v845, 1
      %v885 = vrot.slane %v572, 1
      %v886 = vsel %vm850, %v884, %v885
      %v887 = vrot.slane %v846, 1
      %v888 = vrot.slane %v573, 1
      %v889 = vsel %vm850, %v887, %v888
      %v890 = vrot.slane %v847, 1
      %v891 = vrot.slane %v574, 1
      %v892 = vsel %vm850, %v890, %v891
      %v893 = vrot.slane %v848, 1
      %v894 = vrot.slane %v575, 1
      %v895 = vsel %vm850, %v893, %v894
      %v896 = vrot.slane %v849, 1
      %v897 = vrot.slane %v576, 1
      %v898 = vsel %vm850, %v896, %v897
      %899 = vrot.lane.b32.xlu0 %v853, 8
      %v900 = vpop.permute.xlu0 %899
      %901 = vrot.lane.b32.xlu0 %v856, 8
      %v902 = vpop.permute.xlu0 %901
      %903 = vrot.lane.b32.xlu0 %v859, 8
      %v904 = vpop.permute.xlu0 %903
      %905 = vrot.lane.b32.xlu0 %v862, 8
      %v906 = vpop.permute.xlu0 %905
      %907 = vrot.lane.b32.xlu0 %v865, 8
      %v908 = vpop.permute.xlu0 %907
      %909 = vrot.lane.b32.xlu0 %v868, 8
      %v910 = vpop.permute.xlu0 %909
      %911 = vrot.lane.b32.xlu0 %v871, 8
      %v912 = vpop.permute.xlu0 %911
      %913 = vrot.lane.b32.xlu0 %v874, 8
      %v914 = vpop.permute.xlu0 %913
      %915 = vrot.lane.b32.xlu0 %v877, 8
      %v916 = vpop.permute.xlu0 %915
      %917 = vrot.lane.b32.xlu0 %v880, 8
      %v918 = vpop.permute.xlu0 %917
      %919 = vrot.lane.b32.xlu0 %v883, 8
      %v920 = vpop.permute.xlu0 %919
      %921 = vrot.lane.b32.xlu0 %v886, 8
      %v922 = vpop.permute.xlu0 %921
      %923 = vrot.lane.b32.xlu0 %v889, 8
      %v924 = vpop.permute.xlu0 %923
      %925 = vrot.lane.b32.xlu0 %v892, 8
      %v926 = vpop.permute.xlu0 %925
      %927 = vrot.lane.b32.xlu0 %v895, 8
      %v928 = vpop.permute.xlu0 %927
      %929 = vrot.lane.b32.xlu0 %v898, 8
      %v930 = vpop.permute.xlu0 %929
      %v963 = vunpack.c.l.b16 %v320
      %v964 = vunpack.c.l.b16 %v321
      %v965 = vunpack.c.l.b16 %v322
      %v966 = vunpack.c.l.b16 %v323
      %v967 = vunpack.c.l.b16 %v324
      %v968 = vunpack.c.l.b16 %v325
      %v969 = vunpack.c.l.b16 %v326
      %v970 = vunpack.c.l.b16 %v327
      %v971 = vunpack.c.l.b16 %v328
      %v972 = vunpack.c.l.b16 %v329
      %v973 = vunpack.c.l.b16 %v330
      %v974 = vunpack.c.l.b16 %v331
      %v975 = vunpack.c.l.b16 %v332
      %v976 = vunpack.c.l.b16 %v333
      %v977 = vunpack.c.l.b16 %v334
      %v978 = vunpack.c.l.b16 %v335
      %v979 = vunpack.c.l.b16 %v336
      %v980 = vunpack.c.l.b16 %v337
      %v981 = vunpack.c.l.b16 %v338
      %v982 = vunpack.c.l.b16 %v339
      %v983 = vunpack.c.l.b16 %v340
      %v984 = vunpack.c.l.b16 %v341
      %v985 = vunpack.c.l.b16 %v342
      %v986 = vunpack.c.l.b16 %v343
      %v987 = vunpack.c.l.b16 %v344
      %v988 = vunpack.c.l.b16 %v345
      %v989 = vunpack.c.l.b16 %v346
      %v990 = vunpack.c.l.b16 %v347
      %v991 = vunpack.c.l.b16 %v348
      %v992 = vunpack.c.l.b16 %v349
      %v993 = vunpack.c.l.b16 %v350
      %v994 = vunpack.c.l.b16 %v351
      %v995 = vpack.c.b16 %v964, %v963
      %v996 = vpack.c.b16 %v966, %v965
      %v997 = vpack.c.b16 %v968, %v967
      %v998 = vpack.c.b16 %v970, %v969
      %v999 = vpack.c.b16 %v972, %v971
      %v1000 = vpack.c.b16 %v974, %v973
      %v1001 = vpack.c.b16 %v976, %v975
      %v1002 = vpack.c.b16 %v978, %v977
      %v1003 = vpack.c.b16 %v980, %v979
      %v1004 = vpack.c.b16 %v982, %v981
      %v1005 = vpack.c.b16 %v984, %v983
      %v1006 = vpack.c.b16 %v986, %v985
      %v1007 = vpack.c.b16 %v988, %v987
      %v1008 = vpack.c.b16 %v990, %v989
      %v1009 = vpack.c.b16 %v992, %v991
      %v1010 = vpack.c.b16 %v994, %v993
      %1011 = vrot.lane.b32.xlu0 %v995, 12
      %v1012 = vpop.permute.xlu0 %1011
      %1013 = vrot.lane.b32.xlu0 %v996, 12
      %v1014 = vpop.permute.xlu0 %1013
      %1015 = vrot.lane.b32.xlu0 %v997, 12
      %v1016 = vpop.permute.xlu0 %1015
      %1017 = vrot.lane.b32.xlu0 %v998, 12
      %v1018 = vpop.permute.xlu0 %1017
      %1019 = vrot.lane.b32.xlu0 %v999, 12
      %v1020 = vpop.permute.xlu0 %1019
      %1021 = vrot.lane.b32.xlu0 %v1000, 12
      %v1022 = vpop.permute.xlu0 %1021
      %1023 = vrot.lane.b32.xlu0 %v1001, 12
      %v1024 = vpop.permute.xlu0 %1023
      %1025 = vrot.lane.b32.xlu0 %v1002, 12
      %v1026 = vpop.permute.xlu0 %1025
      %1027 = vrot.lane.b32.xlu0 %v1003, 12
      %v1028 = vpop.permute.xlu0 %1027
      %1029 = vrot.lane.b32.xlu0 %v1004, 12
      %v1030 = vpop.permute.xlu0 %1029
      %1031 = vrot.lane.b32.xlu0 %v1005, 12
      %v1032 = vpop.permute.xlu0 %1031
      %1033 = vrot.lane.b32.xlu0 %v1006, 12
      %v1034 = vpop.permute.xlu0 %1033
      %1035 = vrot.lane.b32.xlu0 %v1007, 12
      %v1036 = vpop.permute.xlu0 %1035
      %1037 = vrot.lane.b32.xlu0 %v1008, 12
      %v1038 = vpop.permute.xlu0 %1037
      %1039 = vrot.lane.b32.xlu0 %v1009, 12
      %v1040 = vpop.permute.xlu0 %1039
      %1041 = vrot.lane.b32.xlu0 %v1010, 12
      %v1042 = vpop.permute.xlu0 %1041
      %v1059 = vunpack.c.l.b16 %v352
      %v1060 = vunpack.c.l.b16 %v353
      %v1061 = vunpack.c.l.b16 %v354
      %v1062 = vunpack.c.l.b16 %v355
      %v1063 = vunpack.c.l.b16 %v356
      %v1064 = vunpack.c.l.b16 %v357
      %v1065 = vunpack.c.l.b16 %v358
      %v1066 = vunpack.c.l.b16 %v359
      %v1067 = vunpack.c.l.b16 %v360
      %v1068 = vunpack.c.l.b16 %v361
      %v1069 = vunpack.c.l.b16 %v362
      %v1070 = vunpack.c.l.b16 %v363
      %v1071 = vunpack.c.l.b16 %v364
      %v1072 = vunpack.c.l.b16 %v365
      %v1073 = vunpack.c.l.b16 %v366
      %v1074 = vunpack.c.l.b16 %v367
      %v1075 = vpack.c.b16 %v1059, %v1059
      %v1076 = vpack.c.b16 %v1060, %v1060
      %v1077 = vpack.c.b16 %v1061, %v1061
      %v1078 = vpack.c.b16 %v1062, %v1062
      %v1079 = vpack.c.b16 %v1063, %v1063
      %v1080 = vpack.c.b16 %v1064, %v1064
      %v1081 = vpack.c.b16 %v1065, %v1065
      %v1082 = vpack.c.b16 %v1066, %v1066
      %v1083 = vpack.c.b16 %v1067, %v1067
      %v1084 = vpack.c.b16 %v1068, %v1068
      %v1085 = vpack.c.b16 %v1069, %v1069
      %v1086 = vpack.c.b16 %v1070, %v1070
      %v1087 = vpack.c.b16 %v1071, %v1071
      %v1088 = vpack.c.b16 %v1072, %v1072
      %v1089 = vpack.c.b16 %v1073, %v1073
      %v1090 = vpack.c.b16 %v1074, %v1074
      %v1092 = vshrl.u32 %v995, 16
      %v1094 = vshll.u32 %v995, 16
      %v1096 = vrot.slane %v1094, 1
      %v1097 = vor.u32 %v1092, %v1096
      %v1099 = vshll.u32 %v1075, 16
      %v1101 = vrot.slane %v1099, 1
      %v1102 = vsel %vm577, %v1097, %v1101
      %v1104 = vshrl.u32 %v996, 16
      %v1106 = vshll.u32 %v996, 16
      %v1108 = vrot.slane %v1106, 1
      %v1109 = vor.u32 %v1104, %v1108
      %v1111 = vshll.u32 %v1076, 16
      %v1113 = vrot.slane %v1111, 1
      %v1114 = vsel %vm577, %v1109, %v1113
      %v1116 = vshrl.u32 %v997, 16
      %v1118 = vshll.u32 %v997, 16
      %v1120 = vrot.slane %v1118, 1
      %v1121 = vor.u32 %v1116, %v1120
      %v1123 = vshll.u32 %v1077, 16
      %v1125 = vrot.slane %v1123, 1
      %v1126 = vsel %vm577, %v1121, %v1125
      %v1128 = vshrl.u32 %v998, 16
      %v1130 = vshll.u32 %v998, 16
      %v1132 = vrot.slane %v1130, 1
      %v1133 = vor.u32 %v1128, %v1132
      %v1135 = vshll.u32 %v1078, 16
      %v1137 = vrot.slane %v1135, 1
      %v1138 = vsel %vm577, %v1133, %v1137
      %v1140 = vshrl.u32 %v999, 16
      %v1142 = vshll.u32 %v999, 16
      %v1144 = vrot.slane %v1142, 1
      %v1145 = vor.u32 %v1140, %v1144
      %v1147 = vshll.u32 %v1079, 16
      %v1149 = vrot.slane %v1147, 1
      %v1150 = vsel %vm577, %v1145, %v1149
      %v1152 = vshrl.u32 %v1000, 16
      %v1154 = vshll.u32 %v1000, 16
      %v1156 = vrot.slane %v1154, 1
      %v1157 = vor.u32 %v1152, %v1156
      %v1159 = vshll.u32 %v1080, 16
      %v1161 = vrot.slane %v1159, 1
      %v1162 = vsel %vm577, %v1157, %v1161
      %v1164 = vshrl.u32 %v1001, 16
      %v1166 = vshll.u32 %v1001, 16
      %v1168 = vrot.slane %v1166, 1
      %v1169 = vor.u32 %v1164, %v1168
      %v1171 = vshll.u32 %v1081, 16
      %v1173 = vrot.slane %v1171, 1
      %v1174 = vsel %vm577, %v1169, %v1173
      %v1176 = vshrl.u32 %v1002, 16
      %v1178 = vshll.u32 %v1002, 16
      %v1180 = vrot.slane %v1178, 1
      %v1181 = vor.u32 %v1176, %v1180
      %v1183 = vshll.u32 %v1082, 16
      %v1185 = vrot.slane %v1183, 1
      %v1186 = vsel %vm577, %v1181, %v1185
      %v1188 = vshrl.u32 %v1003, 16
      %v1190 = vshll.u32 %v1003, 16
      %v1192 = vrot.slane %v1190, 1
      %v1193 = vor.u32 %v1188, %v1192
      %v1195 = vshll.u32 %v1083, 16
      %v1197 = vrot.slane %v1195, 1
      %v1198 = vsel %vm577, %v1193, %v1197
      %v1200 = vshrl.u32 %v1004, 16
      %v1202 = vshll.u32 %v1004, 16
      %v1204 = vrot.slane %v1202, 1
      %v1205 = vor.u32 %v1200, %v1204
      %v1207 = vshll.u32 %v1084, 16
      %v1209 = vrot.slane %v1207, 1
      %v1210 = vsel %vm577, %v1205, %v1209
      %v1212 = vshrl.u32 %v1005, 16
      %v1214 = vshll.u32 %v1005, 16
      %v1216 = vrot.slane %v1214, 1
      %v1217 = vor.u32 %v1212, %v1216
      %v1219 = vshll.u32 %v1085, 16
      %v1221 = vrot.slane %v1219, 1
      %v1222 = vsel %vm577, %v1217, %v1221
      %v1224 = vshrl.u32 %v1006, 16
      %v1226 = vshll.u32 %v1006, 16
      %v1228 = vrot.slane %v1226, 1
      %v1229 = vor.u32 %v1224, %v1228
      %v1231 = vshll.u32 %v1086, 16
      %v1233 = vrot.slane %v1231, 1
      %v1234 = vsel %vm577, %v1229, %v1233
      %v1236 = vshrl.u32 %v1007, 16
      %v1238 = vshll.u32 %v1007, 16
      %v1240 = vrot.slane %v1238, 1
      %v1241 = vor.u32 %v1236, %v1240
      %v1243 = vshll.u32 %v1087, 16
      %v1245 = vrot.slane %v1243, 1
      %v1246 = vsel %vm577, %v1241, %v1245
      %v1248 = vshrl.u32 %v1008, 16
      %v1250 = vshll.u32 %v1008, 16
      %v1252 = vrot.slane %v1250, 1
      %v1253 = vor.u32 %v1248, %v1252
      %v1255 = vshll.u32 %v1088, 16
      %v1257 = vrot.slane %v1255, 1
      %v1258 = vsel %vm577, %v1253, %v1257
      %v1260 = vshrl.u32 %v1009, 16
      %v1262 = vshll.u32 %v1009, 16
      %v1264 = vrot.slane %v1262, 1
      %v1265 = vor.u32 %v1260, %v1264
      %v1267 = vshll.u32 %v1089, 16
      %v1269 = vrot.slane %v1267, 1
      %v1270 = vsel %vm577, %v1265, %v1269
      %v1272 = vshrl.u32 %v1010, 16
      %v1274 = vshll.u32 %v1010, 16
      %v1276 = vrot.slane %v1274, 1
      %v1277 = vor.u32 %v1272, %v1276
      %v1279 = vshll.u32 %v1090, 16
      %v1281 = vrot.slane %v1279, 1
      %v1282 = vsel %vm577, %v1277, %v1281
      %1283 = vrot.lane.b32.xlu0 %v1102, 16
      %v1284 = vpop.permute.xlu0 %1283
      %1285 = vrot.lane.b32.xlu0 %v1114, 16
      %v1286 = vpop.permute.xlu0 %1285
      %1287 = vrot.lane.b32.xlu0 %v1126, 16
      %v1288 = vpop.permute.xlu0 %1287
      %1289 = vrot.lane.b32.xlu0 %v1138, 16
      %v1290 = vpop.permute.xlu0 %1289
      %1291 = vrot.lane.b32.xlu0 %v1150, 16
      %v1292 = vpop.permute.xlu0 %1291
      %1293 = vrot.lane.b32.xlu0 %v1162, 16
      %v1294 = vpop.permute.xlu0 %1293
      %1295 = vrot.lane.b32.xlu0 %v1174, 16
      %v1296 = vpop.permute.xlu0 %1295
      %1297 = vrot.lane.b32.xlu0 %v1186, 16
      %v1298 = vpop.permute.xlu0 %1297
      %1299 = vrot.lane.b32.xlu0 %v1198, 16
      %v1300 = vpop.permute.xlu0 %1299
      %1301 = vrot.lane.b32.xlu0 %v1210, 16
      %v1302 = vpop.permute.xlu0 %1301
      %1303 = vrot.lane.b32.xlu0 %v1222, 16
      %v1304 = vpop.permute.xlu0 %1303
      %1305 = vrot.lane.b32.xlu0 %v1234, 16
      %v1306 = vpop.permute.xlu0 %1305
      %1307 = vrot.lane.b32.xlu0 %v1246, 16
      %v1308 = vpop.permute.xlu0 %1307
      %1309 = vrot.lane.b32.xlu0 %v1258, 16
      %v1310 = vpop.permute.xlu0 %1309
      %1311 = vrot.lane.b32.xlu0 %v1270, 16
      %v1312 = vpop.permute.xlu0 %1311
      %1313 = vrot.lane.b32.xlu0 %v1282, 16
      %v1314 = vpop.permute.xlu0 %1313
      %v1331 = vunpack.c.l.b16 %v368
      %v1332 = vunpack.c.l.b16 %v369
      %v1333 = vunpack.c.l.b16 %v370
      %v1334 = vunpack.c.l.b16 %v371
      %v1335 = vunpack.c.l.b16 %v372
      %v1336 = vunpack.c.l.b16 %v373
      %v1337 = vunpack.c.l.b16 %v374
      %v1338 = vunpack.c.l.b16 %v375
      %v1339 = vunpack.c.l.b16 %v376
      %v1340 = vunpack.c.l.b16 %v377
      %v1341 = vunpack.c.l.b16 %v378
      %v1342 = vunpack.c.l.b16 %v379
      %v1343 = vunpack.c.l.b16 %v380
      %v1344 = vunpack.c.l.b16 %v381
      %v1345 = vunpack.c.l.b16 %v382
      %v1346 = vunpack.c.l.b16 %v383
      %v1347 = vpack.c.b16 %v964, %v1331
      %v1348 = vpack.c.b16 %v966, %v1332
      %v1349 = vpack.c.b16 %v968, %v1333
      %v1350 = vpack.c.b16 %v970, %v1334
      %v1351 = vpack.c.b16 %v972, %v1335
      %v1352 = vpack.c.b16 %v974, %v1336
      %v1353 = vpack.c.b16 %v976, %v1337
      %v1354 = vpack.c.b16 %v978, %v1338
      %v1355 = vpack.c.b16 %v980, %v1339
      %v1356 = vpack.c.b16 %v982, %v1340
      %v1357 = vpack.c.b16 %v984, %v1341
      %v1358 = vpack.c.b16 %v986, %v1342
      %v1359 = vpack.c.b16 %v988, %v1343
      %v1360 = vpack.c.b16 %v990, %v1344
      %v1361 = vpack.c.b16 %v992, %v1345
      %v1362 = vpack.c.b16 %v994, %v1346
      %v1363 = vrot.slane %v1347, 1
      %v1364 = vrot.slane %v1075, 1
      %v1365 = vsel %vm850, %v1363, %v1364
      %v1366 = vrot.slane %v1348, 1
      %v1367 = vrot.slane %v1076, 1
      %v1368 = vsel %vm850, %v1366, %v1367
      %v1369 = vrot.slane %v1349, 1
      %v1370 = vrot.slane %v1077, 1
      %v1371 = vsel %vm850, %v1369, %v1370
      %v1372 = vrot.slane %v1350, 1
      %v1373 = vrot.slane %v1078, 1
      %v1374 = vsel %vm850, %v1372, %v1373
      %v1375 = vrot.slane %v1351, 1
      %v1376 = vrot.slane %v1079, 1
      %v1377 = vsel %vm850, %v1375, %v1376
      %v1378 = vrot.slane %v1352, 1
      %v1379 = vrot.slane %v1080, 1
      %v1380 = vsel %vm850, %v1378, %v1379
      %v1381 = vrot.slane %v1353, 1
      %v1382 = vrot.slane %v1081, 1
      %v1383 = vsel %vm850, %v1381, %v1382
      %v1384 = vrot.slane %v1354, 1
      %v1385 = vrot.slane %v1082, 1
      %v1386 = vsel %vm850, %v1384, %v1385
      %v1387 = vrot.slane %v1355, 1
      %v1388 = vrot.slane %v1083, 1
      %v1389 = vsel %vm850, %v1387, %v1388
      %v1390 = vrot.slane %v1356, 1
      %v1391 = vrot.slane %v1084, 1
      %v1392 = vsel %vm850, %v1390, %v1391
      %v1393 = vrot.slane %v1357, 1
      %v1394 = vrot.slane %v1085, 1
      %v1395 = vsel %vm850, %v1393, %v1394
      %v1396 = vrot.slane %v1358, 1
      %v1397 = vrot.slane %v1086, 1
      %v1398 = vsel %vm850, %v1396, %v1397
      %v1399 = vrot.slane %v1359, 1
      %v1400 = vrot.slane %v1087, 1
      %v1401 = vsel %vm850, %v1399, %v1400
      %v1402 = vrot.slane %v1360, 1
      %v1403 = vrot.slane %v1088, 1
      %v1404 = vsel %vm850, %v1402, %v1403
      %v1405 = vrot.slane %v1361, 1
      %v1406 = vrot.slane %v1089, 1
      %v1407 = vsel %vm850, %v1405, %v1406
      %v1408 = vrot.slane %v1362, 1
      %v1409 = vrot.slane %v1090, 1
      %v1410 = vsel %vm850, %v1408, %v1409
      %1411 = vrot.lane.b32.xlu0 %v1365, 20
      %v1412 = vpop.permute.xlu0 %1411
      %1413 = vrot.lane.b32.xlu0 %v1368, 20
      %v1414 = vpop.permute.xlu0 %1413
      %1415 = vrot.lane.b32.xlu0 %v1371, 20
      %v1416 = vpop.permute.xlu0 %1415
      %1417 = vrot.lane.b32.xlu0 %v1374, 20
      %v1418 = vpop.permute.xlu0 %1417
      %1419 = vrot.lane.b32.xlu0 %v1377, 20
      %v1420 = vpop.permute.xlu0 %1419
      %1421 = vrot.lane.b32.xlu0 %v1380, 20
      %v1422 = vpop.permute.xlu0 %1421
      %1423 = vrot.lane.b32.xlu0 %v1383, 20
      %v1424 = vpop.permute.xlu0 %1423
      %1425 = vrot.lane.b32.xlu0 %v1386, 20
      %v1426 = vpop.permute.xlu0 %1425
      %1427 = vrot.lane.b32.xlu0 %v1389, 20
      %v1428 = vpop.permute.xlu0 %1427
      %1429 = vrot.lane.b32.xlu0 %v1392, 20
      %v1430 = vpop.permute.xlu0 %1429
      %1431 = vrot.lane.b32.xlu0 %v1395, 20
      %v1432 = vpop.permute.xlu0 %1431
      %1433 = vrot.lane.b32.xlu0 %v1398, 20
      %v1434 = vpop.permute.xlu0 %1433
      %1435 = vrot.lane.b32.xlu0 %v1401, 20
      %v1436 = vpop.permute.xlu0 %1435
      %1437 = vrot.lane.b32.xlu0 %v1404, 20
      %v1438 = vpop.permute.xlu0 %1437
      %1439 = vrot.lane.b32.xlu0 %v1407, 20
      %v1440 = vpop.permute.xlu0 %1439
      %1441 = vrot.lane.b32.xlu0 %v1410, 20
      %v1442 = vpop.permute.xlu0 %1441
      %v1475 = vunpack.c.l.b16 %v385
      %v1476 = vunpack.c.l.b16 %v386
      %v1477 = vunpack.c.l.b16 %v387
      %v1478 = vunpack.c.l.b16 %v388
      %v1479 = vunpack.c.l.b16 %v389
      %v1480 = vunpack.c.l.b16 %v390
      %v1481 = vunpack.c.l.b16 %v391
      %v1482 = vunpack.c.l.b16 %v392
      %v1483 = vunpack.c.l.b16 %v393
      %v1484 = vunpack.c.l.b16 %v394
      %v1485 = vunpack.c.l.b16 %v395
      %v1486 = vunpack.c.l.b16 %v396
      %v1487 = vunpack.c.l.b16 %v397
      %v1488 = vunpack.c.l.b16 %v398
      %v1489 = vunpack.c.l.b16 %v399
      %v1490 = vunpack.c.l.b16 %v400
      %v1491 = vunpack.c.l.b16 %v401
      %v1492 = vunpack.c.l.b16 %v402
      %v1493 = vunpack.c.l.b16 %v403
      %v1494 = vunpack.c.l.b16 %v404
      %v1495 = vunpack.c.l.b16 %v405
      %v1496 = vunpack.c.l.b16 %v406
      %v1497 = vunpack.c.l.b16 %v407
      %v1498 = vunpack.c.l.b16 %v408
      %v1499 = vunpack.c.l.b16 %v409
      %v1500 = vunpack.c.l.b16 %v410
      %v1501 = vunpack.c.l.b16 %v411
      %v1502 = vunpack.c.l.b16 %v412
      %v1503 = vunpack.c.l.b16 %v413
      %v1504 = vunpack.c.l.b16 %v414
      %v1505 = vunpack.c.l.b16 %v415
      %v1506 = vunpack.c.l.b16 %v416
      %v1507 = vpack.c.b16 %v1476, %v1475
      %v1508 = vpack.c.b16 %v1478, %v1477
      %v1509 = vpack.c.b16 %v1480, %v1479
      %v1510 = vpack.c.b16 %v1482, %v1481
      %v1511 = vpack.c.b16 %v1484, %v1483
      %v1512 = vpack.c.b16 %v1486, %v1485
      %v1513 = vpack.c.b16 %v1488, %v1487
      %v1514 = vpack.c.b16 %v1490, %v1489
      %v1515 = vpack.c.b16 %v1492, %v1491
      %v1516 = vpack.c.b16 %v1494, %v1493
      %v1517 = vpack.c.b16 %v1496, %v1495
      %v1518 = vpack.c.b16 %v1498, %v1497
      %v1519 = vpack.c.b16 %v1500, %v1499
      %v1520 = vpack.c.b16 %v1502, %v1501
      %v1521 = vpack.c.b16 %v1504, %v1503
      %v1522 = vpack.c.b16 %v1506, %v1505
      %1523 = vrot.lane.b32.xlu0 %v1507, 24
      %v1524 = vpop.permute.xlu0 %1523
      %1525 = vrot.lane.b32.xlu0 %v1508, 24
      %v1526 = vpop.permute.xlu0 %1525
      %1527 = vrot.lane.b32.xlu0 %v1509, 24
      %v1528 = vpop.permute.xlu0 %1527
      %1529 = vrot.lane.b32.xlu0 %v1510, 24
      %v1530 = vpop.permute.xlu0 %1529
      %1531 = vrot.lane.b32.xlu0 %v1511, 24
      %v1532 = vpop.permute.xlu0 %1531
      %1533 = vrot.lane.b32.xlu0 %v1512, 24
      %v1534 = vpop.permute.xlu0 %1533
      %1535 = vrot.lane.b32.xlu0 %v1513, 24
      %v1536 = vpop.permute.xlu0 %1535
      %1537 = vrot.lane.b32.xlu0 %v1514, 24
      %v1538 = vpop.permute.xlu0 %1537
      %1539 = vrot.lane.b32.xlu0 %v1515, 24
      %v1540 = vpop.permute.xlu0 %1539
      %1541 = vrot.lane.b32.xlu0 %v1516, 24
      %v1542 = vpop.permute.xlu0 %1541
      %1543 = vrot.lane.b32.xlu0 %v1517, 24
      %v1544 = vpop.permute.xlu0 %1543
      %1545 = vrot.lane.b32.xlu0 %v1518, 24
      %v1546 = vpop.permute.xlu0 %1545
      %1547 = vrot.lane.b32.xlu0 %v1519, 24
      %v1548 = vpop.permute.xlu0 %1547
      %1549 = vrot.lane.b32.xlu0 %v1520, 24
      %v1550 = vpop.permute.xlu0 %1549
      %1551 = vrot.lane.b32.xlu0 %v1521, 24
      %v1552 = vpop.permute.xlu0 %1551
      %1553 = vrot.lane.b32.xlu0 %v1522, 24
      %v1554 = vpop.permute.xlu0 %1553
      %v1571 = vunpack.c.l.b16 %v417
      %v1572 = vunpack.c.l.b16 %v418
      %v1573 = vunpack.c.l.b16 %v419
      %v1574 = vunpack.c.l.b16 %v420
      %v1575 = vunpack.c.l.b16 %v421
      %v1576 = vunpack.c.l.b16 %v422
      %v1577 = vunpack.c.l.b16 %v423
      %v1578 = vunpack.c.l.b16 %v424
      %v1579 = vunpack.c.l.b16 %v425
      %v1580 = vunpack.c.l.b16 %v426
      %v1581 = vunpack.c.l.b16 %v427
      %v1582 = vunpack.c.l.b16 %v428
      %v1583 = vunpack.c.l.b16 %v429
      %v1584 = vunpack.c.l.b16 %v430
      %v1585 = vunpack.c.l.b16 %v431
      %v1586 = vunpack.c.l.b16 %v432
      %v1587 = vpack.c.b16 %v1571, %v1571
      %v1588 = vpack.c.b16 %v1572, %v1572
      %v1589 = vpack.c.b16 %v1573, %v1573
      %v1590 = vpack.c.b16 %v1574, %v1574
      %v1591 = vpack.c.b16 %v1575, %v1575
      %v1592 = vpack.c.b16 %v1576, %v1576
      %v1593 = vpack.c.b16 %v1577, %v1577
      %v1594 = vpack.c.b16 %v1578, %v1578
      %v1595 = vpack.c.b16 %v1579, %v1579
      %v1596 = vpack.c.b16 %v1580, %v1580
      %v1597 = vpack.c.b16 %v1581, %v1581
      %v1598 = vpack.c.b16 %v1582, %v1582
      %v1599 = vpack.c.b16 %v1583, %v1583
      %v1600 = vpack.c.b16 %v1584, %v1584
      %v1601 = vpack.c.b16 %v1585, %v1585
      %v1602 = vpack.c.b16 %v1586, %v1586
      %v1604 = vshrl.u32 %v1507, 16
      %v1606 = vshll.u32 %v1507, 16
      %v1608 = vrot.slane %v1606, 1
      %v1609 = vor.u32 %v1604, %v1608
      %v1611 = vshll.u32 %v1587, 16
      %v1613 = vrot.slane %v1611, 1
      %v1614 = vsel %vm577, %v1609, %v1613
      %v1616 = vshrl.u32 %v1508, 16
      %v1618 = vshll.u32 %v1508, 16
      %v1620 = vrot.slane %v1618, 1
      %v1621 = vor.u32 %v1616, %v1620
      %v1623 = vshll.u32 %v1588, 16
      %v1625 = vrot.slane %v1623, 1
      %v1626 = vsel %vm577, %v1621, %v1625
      %v1628 = vshrl.u32 %v1509, 16
      %v1630 = vshll.u32 %v1509, 16
      %v1632 = vrot.slane %v1630, 1
      %v1633 = vor.u32 %v1628, %v1632
      %v1635 = vshll.u32 %v1589, 16
      %v1637 = vrot.slane %v1635, 1
      %v1638 = vsel %vm577, %v1633, %v1637
      %v1640 = vshrl.u32 %v1510, 16
      %v1642 = vshll.u32 %v1510, 16
      %v1644 = vrot.slane %v1642, 1
      %v1645 = vor.u32 %v1640, %v1644
      %v1647 = vshll.u32 %v1590, 16
      %v1649 = vrot.slane %v1647, 1
      %v1650 = vsel %vm577, %v1645, %v1649
      %v1652 = vshrl.u32 %v1511, 16
      %v1654 = vshll.u32 %v1511, 16
      %v1656 = vrot.slane %v1654, 1
      %v1657 = vor.u32 %v1652, %v1656
      %v1659 = vshll.u32 %v1591, 16
      %v1661 = vrot.slane %v1659, 1
      %v1662 = vsel %vm577, %v1657, %v1661
      %v1664 = vshrl.u32 %v1512, 16
      %v1666 = vshll.u32 %v1512, 16
      %v1668 = vrot.slane %v1666, 1
      %v1669 = vor.u32 %v1664, %v1668
      %v1671 = vshll.u32 %v1592, 16
      %v1673 = vrot.slane %v1671, 1
      %v1674 = vsel %vm577, %v1669, %v1673
      %v1676 = vshrl.u32 %v1513, 16
      %v1678 = vshll.u32 %v1513, 16
      %v1680 = vrot.slane %v1678, 1
      %v1681 = vor.u32 %v1676, %v1680
      %v1683 = vshll.u32 %v1593, 16
      %v1685 = vrot.slane %v1683, 1
      %v1686 = vsel %vm577, %v1681, %v1685
      %v1688 = vshrl.u32 %v1514, 16
      %v1690 = vshll.u32 %v1514, 16
      %v1692 = vrot.slane %v1690, 1
      %v1693 = vor.u32 %v1688, %v1692
      %v1695 = vshll.u32 %v1594, 16
      %v1697 = vrot.slane %v1695, 1
      %v1698 = vsel %vm577, %v1693, %v1697
      %v1700 = vshrl.u32 %v1515, 16
      %v1702 = vshll.u32 %v1515, 16
      %v1704 = vrot.slane %v1702, 1
      %v1705 = vor.u32 %v1700, %v1704
      %v1707 = vshll.u32 %v1595, 16
      %v1709 = vrot.slane %v1707, 1
      %v1710 = vsel %vm577, %v1705, %v1709
      %v1712 = vshrl.u32 %v1516, 16
      %v1714 = vshll.u32 %v1516, 16
      %v1716 = vrot.slane %v1714, 1
      %v1717 = vor.u32 %v1712, %v1716
      %v1719 = vshll.u32 %v1596, 16
      %v1721 = vrot.slane %v1719, 1
      %v1722 = vsel %vm577, %v1717, %v1721
      %v1724 = vshrl.u32 %v1517, 16
      %v1726 = vshll.u32 %v1517, 16
      %v1728 = vrot.slane %v1726, 1
      %v1729 = vor.u32 %v1724, %v1728
      %v1731 = vshll.u32 %v1597, 16
      %v1733 = vrot.slane %v1731, 1
      %v1734 = vsel %vm577, %v1729, %v1733
      %v1736 = vshrl.u32 %v1518, 16
      %v1738 = vshll.u32 %v1518, 16
      %v1740 = vrot.slane %v1738, 1
      %v1741 = vor.u32 %v1736, %v1740
      %v1743 = vshll.u32 %v1598, 16
      %v1745 = vrot.slane %v1743, 1
      %v1746 = vsel %vm577, %v1741, %v1745
      %v1748 = vshrl.u32 %v1519, 16
      %v1750 = vshll.u32 %v1519, 16
      %v1752 = vrot.slane %v1750, 1
      %v1753 = vor.u32 %v1748, %v1752
      %v1755 = vshll.u32 %v1599, 16
      %v1757 = vrot.slane %v1755, 1
      %v1758 = vsel %vm577, %v1753, %v1757
      %v1760 = vshrl.u32 %v1520, 16
      %v1762 = vshll.u32 %v1520, 16
      %v1764 = vrot.slane %v1762, 1
      %v1765 = vor.u32 %v1760, %v1764
      %v1767 = vshll.u32 %v1600, 16
      %v1769 = vrot.slane %v1767, 1
      %v1770 = vsel %vm577, %v1765, %v1769
      %v1772 = vshrl.u32 %v1521, 16
      %v1774 = vshll.u32 %v1521, 16
      %v1776 = vrot.slane %v1774, 1
      %v1777 = vor.u32 %v1772, %v1776
      %v1779 = vshll.u32 %v1601, 16
      %v1781 = vrot.slane %v1779, 1
      %v1782 = vsel %vm577, %v1777, %v1781
      %v1784 = vshrl.u32 %v1522, 16
      %v1786 = vshll.u32 %v1522, 16
      %v1788 = vrot.slane %v1786, 1
      %v1789 = vor.u32 %v1784, %v1788
      %v1791 = vshll.u32 %v1602, 16
      %v1793 = vrot.slane %v1791, 1
      %v1794 = vsel %vm577, %v1789, %v1793
      %1795 = vrot.lane.b32.xlu0 %v1614, 28
      %v1796 = vpop.permute.xlu0 %1795
      %1797 = vrot.lane.b32.xlu0 %v1626, 28
      %v1798 = vpop.permute.xlu0 %1797
      %1799 = vrot.lane.b32.xlu0 %v1638, 28
      %v1800 = vpop.permute.xlu0 %1799
      %1801 = vrot.lane.b32.xlu0 %v1650, 28
      %v1802 = vpop.permute.xlu0 %1801
      %1803 = vrot.lane.b32.xlu0 %v1662, 28
      %v1804 = vpop.permute.xlu0 %1803
      %1805 = vrot.lane.b32.xlu0 %v1674, 28
      %v1806 = vpop.permute.xlu0 %1805
      %1807 = vrot.lane.b32.xlu0 %v1686, 28
      %v1808 = vpop.permute.xlu0 %1807
      %1809 = vrot.lane.b32.xlu0 %v1698, 28
      %v1810 = vpop.permute.xlu0 %1809
      %1811 = vrot.lane.b32.xlu0 %v1710, 28
      %v1812 = vpop.permute.xlu0 %1811
      %1813 = vrot.lane.b32.xlu0 %v1722, 28
      %v1814 = vpop.permute.xlu0 %1813
      %1815 = vrot.lane.b32.xlu0 %v1734, 28
      %v1816 = vpop.permute.xlu0 %1815
      %1817 = vrot.lane.b32.xlu0 %v1746, 28
      %v1818 = vpop.permute.xlu0 %1817
      %1819 = vrot.lane.b32.xlu0 %v1758, 28
      %v1820 = vpop.permute.xlu0 %1819
      %1821 = vrot.lane.b32.xlu0 %v1770, 28
      %v1822 = vpop.permute.xlu0 %1821
      %1823 = vrot.lane.b32.xlu0 %v1782, 28
      %v1824 = vpop.permute.xlu0 %1823
      %1825 = vrot.lane.b32.xlu0 %v1794, 28
      %v1826 = vpop.permute.xlu0 %1825
      %v1843 = vunpack.c.l.b16 %v433
      %v1844 = vunpack.c.l.b16 %v434
      %v1845 = vunpack.c.l.b16 %v435
      %v1846 = vunpack.c.l.b16 %v436
      %v1847 = vunpack.c.l.b16 %v437
      %v1848 = vunpack.c.l.b16 %v438
      %v1849 = vunpack.c.l.b16 %v439
      %v1850 = vunpack.c.l.b16 %v440
      %v1851 = vunpack.c.l.b16 %v441
      %v1852 = vunpack.c.l.b16 %v442
      %v1853 = vunpack.c.l.b16 %v443
      %v1854 = vunpack.c.l.b16 %v444
      %v1855 = vunpack.c.l.b16 %v445
      %v1856 = vunpack.c.l.b16 %v446
      %v1857 = vunpack.c.l.b16 %v447
      %v1858 = vunpack.c.l.b16 %v448
      %v1859 = vpack.c.b16 %v1476, %v1843
      %v1860 = vpack.c.b16 %v1478, %v1844
      %v1861 = vpack.c.b16 %v1480, %v1845
      %v1862 = vpack.c.b16 %v1482, %v1846
      %v1863 = vpack.c.b16 %v1484, %v1847
      %v1864 = vpack.c.b16 %v1486, %v1848
      %v1865 = vpack.c.b16 %v1488, %v1849
      %v1866 = vpack.c.b16 %v1490, %v1850
      %v1867 = vpack.c.b16 %v1492, %v1851
      %v1868 = vpack.c.b16 %v1494, %v1852
      %v1869 = vpack.c.b16 %v1496, %v1853
      %v1870 = vpack.c.b16 %v1498, %v1854
      %v1871 = vpack.c.b16 %v1500, %v1855
      %v1872 = vpack.c.b16 %v1502, %v1856
      %v1873 = vpack.c.b16 %v1504, %v1857
      %v1874 = vpack.c.b16 %v1506, %v1858
      %v1875 = vrot.slane %v1859, 1
      %v1876 = vrot.slane %v1587, 1
      %v1877 = vsel %vm850, %v1875, %v1876
      %v1878 = vrot.slane %v1860, 1
      %v1879 = vrot.slane %v1588, 1
      %v1880 = vsel %vm850, %v1878, %v1879
      %v1881 = vrot.slane %v1861, 1
      %v1882 = vrot.slane %v1589, 1
      %v1883 = vsel %vm850, %v1881, %v1882
      %v1884 = vrot.slane %v1862, 1
      %v1885 = vrot.slane %v1590, 1
      %v1886 = vsel %vm850, %v1884, %v1885
      %v1887 = vrot.slane %v1863, 1
      %v1888 = vrot.slane %v1591, 1
      %v1889 = vsel %vm850, %v1887, %v1888
      %v1890 = vrot.slane %v1864, 1
      %v1891 = vrot.slane %v1592, 1
      %v1892 = vsel %vm850, %v1890, %v1891
      %v1893 = vrot.slane %v1865, 1
      %v1894 = vrot.slane %v1593, 1
      %v1895 = vsel %vm850, %v1893, %v1894
      %v1896 = vrot.slane %v1866, 1
      %v1897 = vrot.slane %v1594, 1
      %v1898 = vsel %vm850, %v1896, %v1897
      %v1899 = vrot.slane %v1867, 1
      %v1900 = vrot.slane %v1595, 1
      %v1901 = vsel %vm850, %v1899, %v1900
      %v1902 = vrot.slane %v1868, 1
      %v1903 = vrot.slane %v1596, 1
      %v1904 = vsel %vm850, %v1902, %v1903
      %v1905 = vrot.slane %v1869, 1
      %v1906 = vrot.slane %v1597, 1
      %v1907 = vsel %vm850, %v1905, %v1906
      %v1908 = vrot.slane %v1870, 1
      %v1909 = vrot.slane %v1598, 1
      %v1910 = vsel %vm850, %v1908, %v1909
      %v1911 = vrot.slane %v1871, 1
      %v1912 = vrot.slane %v1599, 1
      %v1913 = vsel %vm850, %v1911, %v1912
      %v1914 = vrot.slane %v1872, 1
      %v1915 = vrot.slane %v1600, 1
      %v1916 = vsel %vm850, %v1914, %v1915
      %v1917 = vrot.slane %v1873, 1
      %v1918 = vrot.slane %v1601, 1
      %v1919 = vsel %vm850, %v1917, %v1918
      %v1920 = vrot.slane %v1874, 1
      %v1921 = vrot.slane %v1602, 1
      %v1922 = vsel %vm850, %v1920, %v1921
      %1923 = vrot.lane.b32.xlu0 %v1877, 32
      %v1924 = vpop.permute.xlu0 %1923
      %1925 = vrot.lane.b32.xlu0 %v1880, 32
      %v1926 = vpop.permute.xlu0 %1925
      %1927 = vrot.lane.b32.xlu0 %v1883, 32
      %v1928 = vpop.permute.xlu0 %1927
      %1929 = vrot.lane.b32.xlu0 %v1886, 32
      %v1930 = vpop.permute.xlu0 %1929
      %1931 = vrot.lane.b32.xlu0 %v1889, 32
      %v1932 = vpop.permute.xlu0 %1931
      %1933 = vrot.lane.b32.xlu0 %v1892, 32
      %v1934 = vpop.permute.xlu0 %1933
      %1935 = vrot.lane.b32.xlu0 %v1895, 32
      %v1936 = vpop.permute.xlu0 %1935
      %1937 = vrot.lane.b32.xlu0 %v1898, 32
      %v1938 = vpop.permute.xlu0 %1937
      %1939 = vrot.lane.b32.xlu0 %v1901, 32
      %v1940 = vpop.permute.xlu0 %1939
      %1941 = vrot.lane.b32.xlu0 %v1904, 32
      %v1942 = vpop.permute.xlu0 %1941
      %1943 = vrot.lane.b32.xlu0 %v1907, 32
      %v1944 = vpop.permute.xlu0 %1943
      %1945 = vrot.lane.b32.xlu0 %v1910, 32
      %v1946 = vpop.permute.xlu0 %1945
      %1947 = vrot.lane.b32.xlu0 %v1913, 32
      %v1948 = vpop.permute.xlu0 %1947
      %1949 = vrot.lane.b32.xlu0 %v1916, 32
      %v1950 = vpop.permute.xlu0 %1949
      %1951 = vrot.lane.b32.xlu0 %v1919, 32
      %v1952 = vpop.permute.xlu0 %1951
      %1953 = vrot.lane.b32.xlu0 %v1922, 32
      %v1954 = vpop.permute.xlu0 %1953
      %vm1955 = vcmask 31744
      %v1957 = vsel %vm1955, %v513, %v771
      %v1959 = vsel %vm1955, %v514, %v773
      %v1961 = vsel %vm1955, %v515, %v775
      %v1963 = vsel %vm1955, %v516, %v777
      %v1965 = vsel %vm1955, %v517, %v779
      %v1967 = vsel %vm1955, %v518, %v781
      %v1969 = vsel %vm1955, %v519, %v783
      %v1971 = vsel %vm1955, %v520, %v785
      %v1973 = vsel %vm1955, %v521, %v787
      %v1975 = vsel %vm1955, %v522, %v789
      %v1977 = vsel %vm1955, %v523, %v791
      %v1979 = vsel %vm1955, %v524, %v793
      %v1981 = vsel %vm1955, %v525, %v795
      %v1983 = vsel %vm1955, %v526, %v797
      %v1985 = vsel %vm1955, %v527, %v799
      %v1987 = vsel %vm1955, %v528, %v801
      %vm1988 = vcmask 64512
      %v1990 = vsel %vm1988, %v1957, %v900
      %v1992 = vsel %vm1988, %v1959, %v902
      %v1994 = vsel %vm1988, %v1961, %v904
      %v1996 = vsel %vm1988, %v1963, %v906
      %v1998 = vsel %vm1988, %v1965, %v908
      %v2000 = vsel %vm1988, %v1967, %v910
      %v2002 = vsel %vm1988, %v1969, %v912
      %v2004 = vsel %vm1988, %v1971, %v914
      %v2006 = vsel %vm1988, %v1973, %v916
      %v2008 = vsel %vm1988, %v1975, %v918
      %v2010 = vsel %vm1988, %v1977, %v920
      %v2012 = vsel %vm1988, %v1979, %v922
      %v2014 = vsel %vm1988, %v1981, %v924
      %v2016 = vsel %vm1988, %v1983, %v926
      %v2018 = vsel %vm1988, %v1985, %v928
      %v2020 = vsel %vm1988, %v1987, %v930
      %vm2021 = vcmask 97280
      %v2023 = vsel %vm2021, %v1990, %v1012
      %v2025 = vsel %vm2021, %v1992, %v1014
      %v2027 = vsel %vm2021, %v1994, %v1016
      %v2029 = vsel %vm2021, %v1996, %v1018
      %v2031 = vsel %vm2021, %v1998, %v1020
      %v2033 = vsel %vm2021, %v2000, %v1022
      %v2035 = vsel %vm2021, %v2002, %v1024
      %v2037 = vsel %vm2021, %v2004, %v1026
      %v2039 = vsel %vm2021, %v2006, %v1028
      %v2041 = vsel %vm2021, %v2008, %v1030
      %v2043 = vsel %vm2021, %v2010, %v1032
      %v2045 = vsel %vm2021, %v2012, %v1034
      %v2047 = vsel %vm2021, %v2014, %v1036
      %v2049 = vsel %vm2021, %v2016, %v1038
      %v2051 = vsel %vm2021, %v2018, %v1040
      %v2053 = vsel %vm2021, %v2020, %v1042
      %vm2054 = vcmask 130048
      %v2056 = vsel %vm2054, %v2023, %v1284
      %v2058 = vsel %vm2054, %v2025, %v1286
      %v2060 = vsel %vm2054, %v2027, %v1288
      %v2062 = vsel %vm2054, %v2029, %v1290
      %v2064 = vsel %vm2054, %v2031, %v1292
      %v2066 = vsel %vm2054, %v2033, %v1294
      %v2068 = vsel %vm2054, %v2035, %v1296
      %v2070 = vsel %vm2054, %v2037, %v1298
      %v2072 = vsel %vm2054, %v2039, %v1300
      %v2074 = vsel %vm2054, %v2041, %v1302
      %v2076 = vsel %vm2054, %v2043, %v1304
      %v2078 = vsel %vm2054, %v2045, %v1306
      %v2080 = vsel %vm2054, %v2047, %v1308
      %v2082 = vsel %vm2054, %v2049, %v1310
      %v2084 = vsel %vm2054, %v2051, %v1312
      %v2086 = vsel %vm2054, %v2053, %v1314
      %vm2087 = vcmask 162816
      %v2089 = vsel %vm2087, %v2056, %v1412
      %v2091 = vsel %vm2087, %v2058, %v1414
      %v2093 = vsel %vm2087, %v2060, %v1416
      %v2095 = vsel %vm2087, %v2062, %v1418
      %v2097 = vsel %vm2087, %v2064, %v1420
      %v2099 = vsel %vm2087, %v2066, %v1422
      %v2101 = vsel %vm2087, %v2068, %v1424
      %v2103 = vsel %vm2087, %v2070, %v1426
      %v2105 = vsel %vm2087, %v2072, %v1428
      %v2107 = vsel %vm2087, %v2074, %v1430
      %v2109 = vsel %vm2087, %v2076, %v1432
      %v2111 = vsel %vm2087, %v2078, %v1434
      %v2113 = vsel %vm2087, %v2080, %v1436
      %v2115 = vsel %vm2087, %v2082, %v1438
      %v2117 = vsel %vm2087, %v2084, %v1440
      %v2119 = vsel %vm2087, %v2086, %v1442
      %vm2120 = vcmask 195584
      %v2122 = vsel %vm2120, %v2089, %v1524
      %v2124 = vsel %vm2120, %v2091, %v1526
      %v2126 = vsel %vm2120, %v2093, %v1528
      %v2128 = vsel %vm2120, %v2095, %v1530
      %v2130 = vsel %vm2120, %v2097, %v1532
      %v2132 = vsel %vm2120, %v2099, %v1534
      %v2134 = vsel %vm2120, %v2101, %v1536
      %v2136 = vsel %vm2120, %v2103, %v1538
      %v2138 = vsel %vm2120, %v2105, %v1540
      %v2140 = vsel %vm2120, %v2107, %v1542
      %v2142 = vsel %vm2120, %v2109, %v1544
      %v2144 = vsel %vm2120, %v2111, %v1546
      %v2146 = vsel %vm2120, %v2113, %v1548
      %v2148 = vsel %vm2120, %v2115, %v1550
      %v2150 = vsel %vm2120, %v2117, %v1552
      %v2152 = vsel %vm2120, %v2119, %v1554
      %vm2153 = vcmask 228352
      %v2155 = vsel %vm2153, %v2122, %v1796
      %v2157 = vsel %vm2153, %v2124, %v1798
      %v2159 = vsel %vm2153, %v2126, %v1800
      %v2161 = vsel %vm2153, %v2128, %v1802
      %v2163 = vsel %vm2153, %v2130, %v1804
      %v2165 = vsel %vm2153, %v2132, %v1806
      %v2167 = vsel %vm2153, %v2134, %v1808
      %v2169 = vsel %vm2153, %v2136, %v1810
      %v2171 = vsel %vm2153, %v2138, %v1812
      %v2173 = vsel %vm2153, %v2140, %v1814
      %v2175 = vsel %vm2153, %v2142, %v1816
      %v2177 = vsel %vm2153, %v2144, %v1818
      %v2179 = vsel %vm2153, %v2146, %v1820
      %v2181 = vsel %vm2153, %v2148, %v1822
      %v2183 = vsel %vm2153, %v2150, %v1824
      %v2185 = vsel %vm2153, %v2152, %v1826
      %vm2186 = vcmask 261120
      %v2188 = vsel %vm2186, %v2155, %v1924
      %v2190 = vsel %vm2186, %v2157, %v1926
      %v2192 = vsel %vm2186, %v2159, %v1928
      %v2194 = vsel %vm2186, %v2161, %v1930
      %v2196 = vsel %vm2186, %v2163, %v1932
      %v2198 = vsel %vm2186, %v2165, %v1934
      %v2200 = vsel %vm2186, %v2167, %v1936
      %v2202 = vsel %vm2186, %v2169, %v1938
      %v2204 = vsel %vm2186, %v2171, %v1940
      %v2206 = vsel %vm2186, %v2173, %v1942
      %v2208 = vsel %vm2186, %v2175, %v1944
      %v2210 = vsel %vm2186, %v2177, %v1946
      %v2212 = vsel %vm2186, %v2179, %v1948
      %v2214 = vsel %vm2186, %v2181, %v1950
      %v2216 = vsel %vm2186, %v2183, %v1952
      %v2218 = vsel %vm2186, %v2185, %v1954
      %v2219 = vld [vmem:[%s237] sm:$0xf]
      %v2220 = vld [vmem:[%s237 + $0x4] sm:$0xf]
      %v2221 = vld [vmem:[%s237 + $0x8] sm:$0xf]
      %v2222 = vld [vmem:[%s237 + $0xc] sm:$0xf]
      %v2223 = vld [vmem:[%s237 + $0x10] sm:$0x3]
      %v2224 = vld [vmem:[%s240] sm:$0x1]
      %v2226 = vlaneseq
      %v2227 = vshrl.u32 %v2226, 7
      %v2228 = vsub.s32 0, %v2227
      %v2229 = vrot.slane %v2224, %v2228
      %v2236 = vunpack.c.l.b16 %v2219
      %v2237 = vunpack.c.l.b16 %v2220
      %v2238 = vunpack.c.l.b16 %v2221
      %v2239 = vunpack.c.l.b16 %v2222
      %v2240 = vunpack.c.l.b16 %v2223
      %v2241 = vpack.c.b16 %v2237, %v2236
      %v2242 = vpack.c.b16 %v2239, %v2238
      %v2243 = vpack.c.b16 %v2240, %v2240
      %vm2246 = vcmask 293888
      %v2247 = vsel %vm2246, %v2188, 0
      %v2249 = vsel %vm2246, %v2190, 0
      %v2251 = vsel %vm2246, %v2192, 0
      %v2253 = vsel %vm2246, %v2194, 0
      %v2255 = vsel %vm2246, %v2196, 0
      %v2257 = vsel %vm2246, %v2198, 0
      %v2259 = vsel %vm2246, %v2200, 0
      %v2261 = vsel %vm2246, %v2202, 0
      %v2263 = vsel %vm2246, %v2204, 0
      %v2265 = vsel %vm2246, %v2206, 0
      %v2267 = vsel %vm2246, %v2208, 0
      %v2269 = vsel %vm2246, %v2210, 0
      %v2271 = vsel %vm2246, %v2212, 0
      %v2273 = vsel %vm2246, %v2214, 0
      %v2275 = vsel %vm2246, %v2216, 0
      %v2277 = vsel %vm2246, %v2218, 0
      %vm2279 = vcmask 1041408
      %v2281 = vsel %vm2279, %v2243, 0
      %2283 = vmatprep.subr.bf16.mxu0 0
      %2284 = vmatpush1.bf16.msra.mxu0 %v2241
      %2285 = vmatprep.subr.bf16.mxu0 0
      %2286 = vmatpush1.bf16.msra.mxu0 %v2242
      %2287 = vmatprep.subr.bf16.mxu0 0
      %2288 = vmatpush1.bf16.msra.mxu0 %v2281
      %2289 = vmatprep.subr.bf16.mxu0 0
      %2290 = vmatpush1.bf16.msra.mxu0 0
      %2291 = vmatprep.subr.bf16.mxu0 0
      %2292 = vmatpush1.bf16.msra.mxu0 0
      %2293 = vmatprep.subr.bf16.mxu0 0
      %2294 = vmatpush1.bf16.msra.mxu0 0
      %2295 = vmatprep.subr.bf16.mxu0 0
      %2296 = vmatpush1.bf16.msra.mxu0 0
      %2297 = vmatprep.subr.bf16.mxu0 0
      %2298 = vmatpush1.bf16.msra.mxu0 0
      %2299 = vmatprep.subr.bf16.mxu0 0
      %2300 = vmatpush1.bf16.msra.mxu0 0
      %2301 = vmatprep.subr.bf16.mxu0 0
      %2302 = vmatpush1.bf16.msra.mxu0 0
      %2303 = vmatprep.subr.bf16.mxu0 0
      %2304 = vmatpush1.bf16.msra.mxu0 0
      %2305 = vmatprep.subr.bf16.mxu0 0
      %2306 = vmatpush1.bf16.msra.mxu0 0
      %2307 = vmatprep.subr.bf16.mxu0 0
      %2308 = vmatpush1.bf16.msra.mxu0 0
      %2309 = vmatprep.subr.bf16.mxu0 0
      %2310 = vmatpush1.bf16.msra.mxu0 0
      %2311 = vmatprep.subr.bf16.mxu0 0
      %2312 = vmatpush1.bf16.msra.mxu0 0
      %2313 = vmatprep.subr.bf16.mxu0 0
      %2314 = vmatpush1.bf16.msra.mxu0 0
      %2315 = vmatprep.mubr.bf16.mxu0 0
      %2316 = vmatmul.mubr.bf16.gmra.mrb[0].mxu0 %v2247
      %v2317 = vpop.f32.mrb[0].mxu0
      %v2318 = vadd.f32 %v2229, %v2317
      %v2319 = vpop.f32.mrb[0].mxu0
      %v2320 = vpop.f32.mrb[0].mxu0
      %v2321 = vadd.f32 %v2229, %v2320
      %v2322 = vpop.f32.mrb[0].mxu0
      %2323 = vmatprep.mubr.bf16.mxu0 0
      %2324 = vmatmul.mubr.bf16.gmra.mrb[0].mxu0 %v2249
      %v2325 = vpop.f32.mrb[0].mxu0
      %v2326 = vadd.f32 %v2229, %v2325
      %v2327 = vpop.f32.mrb[0].mxu0
      %v2328 = vpop.f32.mrb[0].mxu0
      %v2329 = vadd.f32 %v2229, %v2328
      %v2330 = vpop.f32.mrb[0].mxu0
      %2331 = vmatprep.mubr.bf16.mxu0 0
      %2332 = vmatmul.mubr.bf16.gmra.mrb[0].mxu0 %v2251
      %v2333 = vpop.f32.mrb[0].mxu0
      %v2334 = vadd.f32 %v2229, %v2333
      %v2335 = vpop.f32.mrb[0].mxu0
      %v2336 = vpop.f32.mrb[0].mxu0
      %v2337 = vadd.f32 %v2229, %v2336
      %v2338 = vpop.f32.mrb[0].mxu0
      %2339 = vmatprep.mubr.bf16.mxu0 0
      %2340 = vmatmul.mubr.bf16.gmra.mrb[0].mxu0 %v2253
      %v2341 = vpop.f32.mrb[0].mxu0
      %v2342 = vadd.f32 %v2229, %v2341
      %v2343 = vpop.f32.mrb[0].mxu0
      %v2344 = vpop.f32.mrb[0].mxu0
      %v2345 = vadd.f32 %v2229, %v2344
      %v2346 = vpop.f32.mrb[0].mxu0
      %2347 = vmatprep.mubr.bf16.mxu0 0
      %2348 = vmatmul.mubr.bf16.gmra.mrb[0].mxu0 %v2255
      %v2349 = vpop.f32.mrb[0].mxu0
      %v2350 = vadd.f32 %v2229, %v2349
      %v2351 = vpop.f32.mrb[0].mxu0
      %v2352 = vpop.f32.mrb[0].mxu0
      %v2353 = vadd.f32 %v2229, %v2352
      %v2354 = vpop.f32.mrb[0].mxu0
      %2355 = vmatprep.mubr.bf16.mxu0 0
      %2356 = vmatmul.mubr.bf16.gmra.mrb[0].mxu0 %v2257
      %v2357 = vpop.f32.mrb[0].mxu0
      %v2358 = vadd.f32 %v2229, %v2357
      %v2359 = vpop.f32.mrb[0].mxu0
      %v2360 = vpop.f32.mrb[0].mxu0
      %v2361 = vadd.f32 %v2229, %v2360
      %v2362 = vpop.f32.mrb[0].mxu0
      %2363 = vmatprep.mubr.bf16.mxu0 0
      %2364 = vmatmul.mubr.bf16.gmra.mrb[0].mxu0 %v2259
      %v2365 = vpop.f32.mrb[0].mxu0
      %v2366 = vadd.f32 %v2229, %v2365
      %v2367 = vpop.f32.mrb[0].mxu0
      %v2368 = vpop.f32.mrb[0].mxu0
      %v2369 = vadd.f32 %v2229, %v2368
      %v2370 = vpop.f32.mrb[0].mxu0
      %2371 = vmatprep.mubr.bf16.mxu0 0
      %2372 = vmatmul.mubr.bf16.gmra.mrb[0].mxu0 %v2261
      %v2373 = vpop.f32.mrb[0].mxu0
      %v2374 = vadd.f32 %v2229, %v2373
      %v2375 = vpop.f32.mrb[0].mxu0
      %v2376 = vpop.f32.mrb[0].mxu0
      %v2377 = vadd.f32 %v2229, %v2376
      %v2378 = vpop.f32.mrb[0].mxu0
      %2379 = vmatprep.mubr.bf16.mxu0 0
      %2380 = vmatmul.mubr.bf16.gmra.mrb[0].mxu0 %v2263
      %v2381 = vpop.f32.mrb[0].mxu0
      %v2382 = vadd.f32 %v2229, %v2381
      %v2383 = vpop.f32.mrb[0].mxu0
      %v2384 = vpop.f32.mrb[0].mxu0
      %v2385 = vadd.f32 %v2229, %v2384
      %v2386 = vpop.f32.mrb[0].mxu0
      %2387 = vmatprep.mubr.bf16.mxu0 0
      %2388 = vmatmul.mubr.bf16.gmra.mrb[0].mxu0 %v2265
      %v2389 = vpop.f32.mrb[0].mxu0
      %v2390 = vadd.f32 %v2229, %v2389
      %v2391 = vpop.f32.mrb[0].mxu0
      %v2392 = vpop.f32.mrb[0].mxu0
      %v2393 = vadd.f32 %v2229, %v2392
      %v2394 = vpop.f32.mrb[0].mxu0
      %2395 = vmatprep.mubr.bf16.mxu0 0
      %2396 = vmatmul.mubr.bf16.gmra.mrb[0].mxu0 %v2267
      %v2397 = vpop.f32.mrb[0].mxu0
      %v2398 = vadd.f32 %v2229, %v2397
      %v2399 = vpop.f32.mrb[0].mxu0
      %v2400 = vpop.f32.mrb[0].mxu0
      %v2401 = vadd.f32 %v2229, %v2400
      %v2402 = vpop.f32.mrb[0].mxu0
      %2403 = vmatprep.mubr.bf16.mxu0 0
      %2404 = vmatmul.mubr.bf16.gmra.mrb[0].mxu0 %v2269
      %v2405 = vpop.f32.mrb[0].mxu0
      %v2406 = vadd.f32 %v2229, %v2405
      %v2407 = vpop.f32.mrb[0].mxu0
      %v2408 = vpop.f32.mrb[0].mxu0
      %v2409 = vadd.f32 %v2229, %v2408
      %v2410 = vpop.f32.mrb[0].mxu0
      %2411 = vmatprep.mubr.bf16.mxu0 0
      %2412 = vmatmul.mubr.bf16.gmra.mrb[0].mxu0 %v2271
      %v2413 = vpop.f32.mrb[0].mxu0
      %v2414 = vadd.f32 %v2229, %v2413
      %v2415 = vpop.f32.mrb[0].mxu0
      %v2416 = vpop.f32.mrb[0].mxu0
      %v2417 = vadd.f32 %v2229, %v2416
      %v2418 = vpop.f32.mrb[0].mxu0
      %2419 = vmatprep.mubr.bf16.mxu0 0
      %2420 = vmatmul.mubr.bf16.gmra.mrb[0].mxu0 %v2273
      %v2421 = vpop.f32.mrb[0].mxu0
      %v2422 = vadd.f32 %v2229, %v2421
      %v2423 = vpop.f32.mrb[0].mxu0
      %v2424 = vpop.f32.mrb[0].mxu0
      %v2425 = vadd.f32 %v2229, %v2424
      %v2426 = vpop.f32.mrb[0].mxu0
      %2427 = vmatprep.mubr.bf16.mxu0 0
      %2428 = vmatmul.mubr.bf16.gmra.mrb[0].mxu0 %v2275
      %v2429 = vpop.f32.mrb[0].mxu0
      %v2430 = vadd.f32 %v2229, %v2429
      %v2431 = vpop.f32.mrb[0].mxu0
      %v2432 = vpop.f32.mrb[0].mxu0
      %v2433 = vadd.f32 %v2229, %v2432
      %v2434 = vpop.f32.mrb[0].mxu0
      %2435 = vmatprep.mubr.bf16.mxu0 0
      %2436 = vmatmul.mubr.bf16.gmra.mrb[0].mxu0 %v2277
      %v2437 = vpop.f32.mrb[0].mxu0
      %v2438 = vadd.f32 %v2229, %v2437
      %v2439 = vpop.f32.mrb[0].mxu0
      %v2440 = vpop.f32.mrb[0].mxu0
      %v2441 = vadd.f32 %v2229, %v2440
      %v2442 = vpop.f32.mrb[0].mxu0
      %2443 = vdwg.mxu0
      %2444 = vst.msk [vmem:[%s252] sm:$0xff] %vm1988, %v2318
      %2445 = vst.msk [vmem:[%s252 + $0x8] sm:$0xff] %vm1988, %v2321
      %2446 = vst.msk [vmem:[%s252 + $0x10] sm:$0xff] %vm1988, %v2326
      %2447 = vst.msk [vmem:[%s252 + $0x18] sm:$0xff] %vm1988, %v2329
      %2448 = vst.msk [vmem:[%s252 + $0x20] sm:$0xff] %vm1988, %v2334
      %2449 = vst.msk [vmem:[%s252 + $0x28] sm:$0xff] %vm1988, %v2337
      %2450 = vst.msk [vmem:[%s252 + $0x30] sm:$0xff] %vm1988, %v2342
      %2451 = vst.msk [vmem:[%s252 + $0x38] sm:$0xff] %vm1988, %v2345
      %2452 = vst.msk [vmem:[%s252 + $0x40] sm:$0xff] %vm1988, %v2350
      %2453 = vst.msk [vmem:[%s252 + $0x48] sm:$0xff] %vm1988, %v2353
      %2454 = vst.msk [vmem:[%s252 + $0x50] sm:$0xff] %vm1988, %v2358
      %2455 = vst.msk [vmem:[%s252 + $0x58] sm:$0xff] %vm1988, %v2361
      %2456 = vst.msk [vmem:[%s252 + $0x60] sm:$0xff] %vm1988, %v2366
      %2457 = vst.msk [vmem:[%s252 + $0x68] sm:$0xff] %vm1988, %v2369
      %2458 = vst.msk [vmem:[%s252 + $0x70] sm:$0xff] %vm1988, %v2374
      %2459 = vst.msk [vmem:[%s252 + $0x78] sm:$0xff] %vm1988, %v2377
      %2460 = vst.msk [vmem:[%s252 + $0x80] sm:$0xff] %vm1988, %v2382
      %2461 = vst.msk [vmem:[%s252 + $0x88] sm:$0xff] %vm1988, %v2385
      %2462 = vst.msk [vmem:[%s252 + $0x90] sm:$0xff] %vm1988, %v2390
      %2463 = vst.msk [vmem:[%s252 + $0x98] sm:$0xff] %vm1988, %v2393
      %2464 = vst.msk [vmem:[%s252 + $0xa0] sm:$0xff] %vm1988, %v2398
      %2465 = vst.msk [vmem:[%s252 + $0xa8] sm:$0xff] %vm1988, %v2401
      %2466 = vst.msk [vmem:[%s252 + $0xb0] sm:$0xff] %vm1988, %v2406
      %2467 = vst.msk [vmem:[%s252 + $0xb8] sm:$0xff] %vm1988, %v2409
      %2468 = vst.msk [vmem:[%s252 + $0xc0] sm:$0xff] %vm1988, %v2414
      %2469 = vst.msk [vmem:[%s252 + $0xc8] sm:$0xff] %vm1988, %v2417
      %2470 = vst.msk [vmem:[%s252 + $0xd0] sm:$0xff] %vm1988, %v2422
      %2471 = vst.msk [vmem:[%s252 + $0xd8] sm:$0xff] %vm1988, %v2425
      %2472 = vst.msk [vmem:[%s252 + $0xe0] sm:$0xff] %vm1988, %v2430
      %2473 = vst.msk [vmem:[%s252 + $0xe8] sm:$0xff] %vm1988, %v2433
      %2474 = vst.msk [vmem:[%s252 + $0xf0] sm:$0xff] %vm1988, %v2438
      %2475 = vst.msk [vmem:[%s252 + $0xf8] sm:$0xff] %vm1988, %v2441
      %s2476 = smul.u32 32, %s21
      %p2477 = scmp.lt.s32.totalorder %s19, 1
      %s2478 = scalar_select %p2477, %s19, 1
      %p2479 = scmp.lt.s32.totalorder %s2476, 31
      %s2480 = scalar_select %p2479, %s2476, 31
      %p2481 = scmp.lt.s32.totalorder %s20, 0
      %s2482 = scalar_select %p2481, %s20, 0
      %s2483 = sadd.s32 %s2482, %s2480
      %s2484 = smul.addr %s2478, 32
      %s2485 = sadd.s32 %s2483, %s2484
      %s2486 = smul.addr %s2485, 8
      %s2487 = scalar_lea.vmem %s3, %s2486
      // Predicated region
      $region33: #{tpu_custom_call.1} parent=31 // pred_check
        %p2488 = pneg %p135
      $region34: #{tpu_custom_call.1} parent=31 // pred_check_branch
        %2490 = sbr.rel (%p2488) target = $region36
      $region35: #{tpu_custom_call.1} parent=31 // pred_region
        %s2491 = smul.u32 32, %s21
      $region36: #{tpu_custom_call.1} parent=31 // pred_fallthru
        _
    $region32: #{tpu_custom_call.1} parent=5 // pred_fallthru
      _
    %p2492 = scmp.le.s32.totalorder 2, %s9
    // Predicated region
    $region37: #{tpu_custom_call.1} parent=5 // pred_check
      %p2493 = pneg %p2492
    $region38: #{tpu_custom_call.1} parent=5 // pred_check_branch
      %2495 = sbr.rel (%p2493) target = $region40
    $region39: #{tpu_custom_call.1} parent=5 // pred_region
      %s2496 = ssub.s32 %s9, 2
      // Predicated region
      $region41: #{tpu_custom_call.1} parent=39 // pred_check
        %p2497 = pneg %p141
      $region42: #{tpu_custom_call.1} parent=39 // pred_check_branch
        %2499 = sbr.rel (%p2497) target = $region44
      $region43: #{tpu_custom_call.1} parent=39 // pred_region
        %s2500 = smul.u32 32, %s24
        %p2501 = scmp.lt.s32.totalorder %s22, 1
        %s2502 = scalar_select %p2501, %s22, 1
        %p2503 = scmp.lt.s32.totalorder %s2500, 31
        %s2504 = scalar_select %p2503, %s2500, 31
        %p2505 = scmp.lt.s32.totalorder %s23, 0
        %s2506 = scalar_select %p2505, %s23, 0
        %s2507 = sadd.s32 %s2506, %s2504
        %s2508 = smul.addr %s2502, 32
        %s2509 = sadd.s32 %s2507, %s2508
        %s2510 = smul.addr %s2509, 8
        %s2511 = scalar_lea.vmem %s3, %s2510
      $region44: #{tpu_custom_call.1} parent=39 // pred_fallthru
        _
    $region40: #{tpu_custom_call.1} parent=5 // pred_fallthru
      _
  $region6: #{tpu_custom_call.1} parent=0 // loop_footer
    %s13 = sadd.s32 1, %s9
  $region7: #{tpu_custom_call.1} parent=0 // loop_footer_branch
    %8 = sbr.rel target = $region3
  $region8: #{tpu_custom_call.1} parent=0 // loop_exit
    _

</llo_original>
